<compile_context>
chip_gen: v7x
topology: tpu7x:2x2x1
jax: 0.10.0
libtpu: 0.0.40
codegen_flags: <defaults>
</compile_context>

<pallas_src>
import jax
import jax.numpy as jnp
from jax.experimental import pallas as pl
from jax.experimental.pallas import tpu as pltpu


def _mul_matmul_kernel(w_ref, s_ref, x_ref, o_ref):
    # w_ref: (Cout, Cin)   raw conv weight, resident across grid steps
    # s_ref: (1, Cin)      per-channel scale (broadcast over Cout sublanes)
    # x_ref: (Cin, tm)     channels x pixel-tile (lane dim = pixels, dense)
    # o_ref: (Cout, tm)
    w = w_ref[...] * s_ref[...]          # fold scale into the tiny weight (VPU, hidden under MXU)
    o_ref[...] = jnp.dot(
        w, x_ref[...], preferred_element_type=jnp.float32
    ).astype(o_ref.dtype)


def _pick_pixel_tile(hw):
    """Default: one full-extent pixel block (grid_m = 1).

    On v7x (2 TensorCores per chip) pick two lane-aligned blocks so the
    'parallel' pixel axis shards across both cores. Falls back to the single
    block if the device kind cannot be queried.
    """
    try:
        kind = jax.devices()[0].device_kind.lower()
    except Exception:
        kind = ""
    if "v7" in kind and hw > 256:
        half = -(-hw // 2)                       # ceil(hw / 2)
        return min(hw, -(-half // 128) * 128)    # round up to a multiple of 128
    return hw


def fused_mul_conv1x1(x_nchw, scale_nc11, weight_oi11, *, pixel_tile=None):
    """Computes conv2d_1x1(scale * x) with no bias. NCHW in, NCHW out.

    x_nchw:      (N, Cin, H, W)
    scale_nc11:  (1, Cin, 1, 1)
    weight_oi11: (Cout, Cin, 1, 1)   (PyTorch Conv2d weight layout)
    returns:     (N, Cout, H, W)
    """
    N, Cin, H, W = x_nchw.shape
    Cout = weight_oi11.shape[0]
    HW = H * W

    dtype = x_nchw.dtype
    w2d = weight_oi11.reshape(Cout, Cin).astype(dtype)     # pure reshape, no math
    s2d = scale_nc11.reshape(1, Cin).astype(dtype)         # pure reshape, no math

    # NCHW consumed via a plain reshape (no transpose): (N, Cin, H*W).
    x_flat = x_nchw.reshape(N, Cin, HW)

    # Pixel (lane) tile.
    if pixel_tile is None:
        tm_eff = _pick_pixel_tile(HW)
    else:
        tm_eff = min(pixel_tile, HW)
    if tm_eff != HW:
        # Non-full blocks must keep lanes 128-aligned for unmasked stores.
        assert tm_eff % 128 == 0, tm_eff
    grid_m = pl.cdiv(HW, tm_eff)

    itemsize = jnp.dtype(dtype).itemsize
    cost = pl.CostEstimate(
        flops=2 * N * HW * Cin * Cout,
        transcendentals=0,
        bytes_accessed=(x_flat.size + w2d.size + s2d.size + N * Cout * HW)
        * itemsize,
    )

    out = pl.pallas_call(
        _mul_matmul_kernel,
        out_shape=jax.ShapeDtypeStruct((N, Cout, HW), dtype),
        grid_spec=pltpu.PrefetchScalarGridSpec(
            num_scalar_prefetch=0,
            grid=(N, grid_m),
            in_specs=[
                # Weight: same block every step -> stays resident in VMEM.
                pl.BlockSpec((Cout, Cin), lambda n, m: (0, 0)),
                # Scale: tiny (1, Cin) vector, same block every step.
                pl.BlockSpec((1, Cin), lambda n, m: (0, 0)),
                # X: batch dim squeezed, full channel dim, pixel tile on lanes.
                pl.BlockSpec((None, Cin, tm_eff), lambda n, m: (n, 0, m)),
            ],
            out_specs=pl.BlockSpec((None, Cout, tm_eff), lambda n, m: (n, 0, m)),
        ),
        compiler_params=pltpu.CompilerParams(
            dimension_semantics=("parallel", "parallel"),
        ),
        cost_estimate=cost,
    )(w2d, s2d, x_flat)

    # Plain reshape back to NCHW (no transpose).
    return out.reshape(N, Cout, H, W)


def reference(x_nchw, scale_nc11, weight_oi11):
    xs = x_nchw * scale_nc11
    w2d = weight_oi11.reshape(weight_oi11.shape[0], -1)
    return jnp.einsum("nchw,oc->nohw", xs, w2d)


if __name__ == "__main__":
    key = jax.random.PRNGKey(0)
    k1, k2, k3 = jax.random.split(key, 3)

    # Shapes from the module spec: (1, 288, 28, 28) -> (1, 80, 28, 28).
    N, Cin, Cout, H, W = 1, 288, 80, 28, 28

    x169 = jax.random.normal(k1, (N, Cin, H, W), dtype=jnp.float32)       # NCHW input
    x174 = jax.random.normal(k2, (1, Cin, 1, 1), dtype=jnp.float32)       # per-channel scale
    weight = (jax.random.normal(k3, (Cout, Cin, 1, 1), dtype=jnp.float32)
              * (1.0 / jnp.sqrt(Cin)))                                    # Conv2d weight

    out = fused_mul_conv1x1(x169, x174, weight)
    out = jax.block_until_ready(out)

    ref = reference(x169, x174, weight)
    assert out.shape == (N, Cout, H, W), out.shape
    max_err = float(jnp.max(jnp.abs(out - ref)))
    assert jnp.allclose(out, ref, atol=2e-4, rtol=1e-4), max_err

    print("KERNEL_OK")
</pallas_src>

<mosaic_0001>
module attributes {stable_mosaic.version = 11 : i64} {
  func.func @_mul_matmul_kernel(%arg0: i32, %arg1: i32, %arg2: memref<80x288xf32, #tpu.memory_space<vmem>>, %arg3: memref<1x288xf32, #tpu.memory_space<vmem>>, %arg4: memref<1x288x784xf32, #tpu.memory_space<vmem>>, %arg5: memref<1x80x784xf32, #tpu.memory_space<vmem>>) attributes {dimension_semantics = [#tpu.dimension_semantics<parallel>, #tpu.dimension_semantics<parallel>], iteration_bounds = array<i64: 1, 1>, scalar_prefetch = 0 : i64, scratch_operands = 0 : i64, tpu.core_type = #tpu.core_type<tc>, window_params = [{pipeline_mode = #tpu.pipeline_mode<synchronous>, transform_indices = @transform_0, window_bounds = array<i64: 80, 288>}, {pipeline_mode = #tpu.pipeline_mode<synchronous>, transform_indices = @transform_1, window_bounds = array<i64: 1, 288>}, {transform_indices = @transform_2, window_bounds = array<i64: 1, 288, 784>}, {transform_indices = @transform_3, window_bounds = array<i64: 1, 80, 784>}]} {
    %c0 = arith.constant 0 : index
    %c0_0 = arith.constant 0 : index
    %0 = vector.load %arg2[%c0, %c0_0] : memref<80x288xf32, #tpu.memory_space<vmem>>, vector<80x288xf32>
    %c0_1 = arith.constant 0 : index
    %c0_2 = arith.constant 0 : index
    %1 = vector.load %arg3[%c0_1, %c0_2] : memref<1x288xf32, #tpu.memory_space<vmem>>, vector<1x288xf32>
    %2 = vector.broadcast %1 : vector<1x288xf32> to vector<80x288xf32>
    %3 = arith.mulf %0, %2 : vector<80x288xf32>
    %c0_3 = arith.constant 0 : index
    %c0_4 = arith.constant 0 : index
    %c0_5 = arith.constant 0 : index
    %4 = vector.load %arg4[%c0_3, %c0_4, %c0_5] : memref<1x288x784xf32, #tpu.memory_space<vmem>>, vector<1x288x784xf32>
    %5 = vector.shape_cast %4 : vector<1x288x784xf32> to vector<288x784xf32>
    %cst = arith.constant dense<0.000000e+00> : vector<80x784xf32>
    %6 = tpu.matmul %3, %5, %cst {dimension_numbers = #tpu.dot_dimension_numbers<[1], [0], [0], [1], [0, 0, 1, 1], [], []>} : vector<80x288xf32>, vector<288x784xf32>, vector<80x784xf32> -> vector<80x784xf32>
    %c0_6 = arith.constant 0 : index
    %c0_7 = arith.constant 0 : index
    %c0_8 = arith.constant 0 : index
    %7 = vector.load %arg5[%c0_6, %c0_7, %c0_8] : memref<1x80x784xf32, #tpu.memory_space<vmem>>, vector<1x80x784xf32>
    %8 = vector.shape_cast %7 : vector<1x80x784xf32> to vector<80x784xf32>
    %9 = vector.shape_cast %6 : vector<80x784xf32> to vector<1x80x784xf32>
    tpu.vector_store %arg5[%c0_6, %c0_7, %c0_8], %9 {strides = array<i32>} : memref<1x80x784xf32, #tpu.memory_space<vmem>>, vector<1x80x784xf32>,
    return
  }
  func.func @transform_0(%arg0: i32, %arg1: i32) -> (i32, i32) {
    %c0_i32 = arith.constant 0 : i32
    %c0_i32_0 = arith.constant 0 : i32
    %c0_i32_1 = arith.constant 0 : i32
    return %c0_i32, %c0_i32_0 : i32, i32
  }
  func.func @transform_1(%arg0: i32, %arg1: i32) -> (i32, i32) {
    %c0_i32 = arith.constant 0 : i32
    %c0_i32_0 = arith.constant 0 : i32
    %c0_i32_1 = arith.constant 0 : i32
    return %c0_i32, %c0_i32_0 : i32, i32
  }
  func.func @transform_2(%arg0: i32, %arg1: i32) -> (i32, i32, i32) {
    %c0_i32 = arith.constant 0 : i32
    %c0_i32_0 = arith.constant 0 : i32
    return %arg0, %c0_i32, %arg1 : i32, i32, i32
  }
  func.func @transform_3(%arg0: i32, %arg1: i32) -> (i32, i32, i32) {
    %c0_i32 = arith.constant 0 : i32
    %c0_i32_0 = arith.constant 0 : i32
    return %arg0, %c0_i32, %arg1 : i32, i32, i32
  }
}

</mosaic_0001>

<llo_original>
// kernel: tpu_custom_call.1
$region0: #{tpu_custom_call.1}
  #allocation0 [shape = 'u32[]', space=smem, size = 0x4, offset = 0x4, fixed_abs, tag = 'smem constant byte address 0x4 - core index']
  #allocation1 [shape = 'u32[144,128]{1,0:T(1,128)}', space=vmem, size = 0x12000, scoped, tag = 'internal scratch']
  %s0 = inlined_call_operand.hbm [shape: f32[80,288], index: 0, kind: input, shape index: {}]
  %s1 = inlined_call_operand.vmem [shape: f32[1,288], index: 1, kind: input, shape index: {}]
  %s2 = inlined_call_operand.hbm [shape: f32[1,288,784], index: 2, kind: input, shape index: {}]
  %s3 = inlined_call_operand.hbm [shape: f32[1,80,784], index: 3, kind: output, shape index: {}]
  %s4 = sld [smem:[#allocation0]]
  $region30: #{tpu_custom_call.1} parent=0
    _
  %s6 = ssub.s32 1, %s4
  %s7 = scalar_select 0, %s6, %s4
  $region1: #{tpu_custom_call.1} parent=0
    #allocation2 [shape = 'u8[122880]{0}', space=vmem, size = 0x1e000, scoped, tag = 'input window, operand 0, single buffered']
    #allocation3 [shape = 's32[1]{0}', space=sflag, size = 0x4, scoped, tag = 'scoped memory for tpu_custom_call.1']
    #allocation4 [shape = 's32[1]{0}', space=sflag, size = 0x4, scoped, tag = 'scoped memory for tpu_custom_call.1']
    #allocation5 [shape = 'u8[1032192]{0}', space=vmem, size = 0xfc000, scoped, tag = 'input window, operand 2, single buffered']
    #allocation6 [shape = 's32[1]{0}', space=sflag, size = 0x4, scoped, tag = 'scoped memory for tpu_custom_call.1']
    #allocation7 [shape = 'u8[286720]{0}', space=vmem, size = 0x46000, scoped, tag = 'output window, operand 0, single buffered']
    %8 = vsyncpa [#allocation3], 0
    %9 = vsyncpa [#allocation6], 0
    %10 = vsyncpa [#allocation4], 0
    // Predicated region
    $region2: #{tpu_custom_call.1} parent=1 // pred_check
      _
    $region3: #{tpu_custom_call.1} parent=1 // pred_check_branch
      %12 = sbr.rel (0) target = $region5
    $region4: #{tpu_custom_call.1} parent=1 // pred_region
      %s14 = ssub.s32 3840, 3840
      %15 = vsyncadd [#allocation3], %s14
      %s16 = sshll.u32 [#allocation2], 4
      %s17 = int_to_ptr.vmem [resolvable:$true] %s16
      %22 = dma.hbm_to_vmem [thread:$0]  %s0, 3840, %s17, [#allocation3], 384, 384, 24
    $region5: #{tpu_custom_call.1} parent=1 // pred_fallthru
      _
    // Predicated region
    $region6: #{tpu_custom_call.1} parent=1 // pred_check
      _
    $region7: #{tpu_custom_call.1} parent=1 // pred_check_branch
      %24 = sbr.rel (0) target = $region9
    $region8: #{tpu_custom_call.1} parent=1 // pred_region
      _
    $region9: #{tpu_custom_call.1} parent=1 // pred_fallthru
      _
    // Predicated region
    $region10: #{tpu_custom_call.1} parent=1 // pred_check
      _
    $region11: #{tpu_custom_call.1} parent=1 // pred_check_branch
      %26 = sbr.rel (0) target = $region13
    $region12: #{tpu_custom_call.1} parent=1 // pred_region
      %s28 = ssub.s32 32256, 32256
      %29 = vsyncadd [#allocation6], %s28
      %s30 = sshll.u32 [#allocation5], 4
      %s31 = int_to_ptr.vmem [resolvable:$true] %s30
      %36 = dma.hbm_to_vmem [thread:$0]  %s2, 32256, %s31, [#allocation6], 896, 896, 56
    $region13: #{tpu_custom_call.1} parent=1 // pred_fallthru
      _
    // Predicated region
    $region14: #{tpu_custom_call.1} parent=1 // pred_check
      _
    $region15: #{tpu_custom_call.1} parent=1 // pred_check_branch
      %38 = sbr.rel (0) target = $region17
    $region16: #{tpu_custom_call.1} parent=1 // pred_region
      %39 = dma.done [#allocation3], 3840
    $region17: #{tpu_custom_call.1} parent=1 // pred_fallthru
      _
    // Predicated region
    $region18: #{tpu_custom_call.1} parent=1 // pred_check
      _
    $region19: #{tpu_custom_call.1} parent=1 // pred_check_branch
      %41 = sbr.rel (0) target = $region21
    $region20: #{tpu_custom_call.1} parent=1 // pred_region
      %42 = dma.done [#allocation6], 32256
    $region21: #{tpu_custom_call.1} parent=1 // pred_fallthru
      _
    %v43 = vld [vmem:[#allocation2] sm:$0xff]
    %v44 = vld [vmem:[#allocation2 + $0x8] sm:$0xff]
    %v45 = vld [vmem:[#allocation2 + $0x10] sm:$0xff]
    %v46 = vld [vmem:[#allocation2 + $0x18] sm:$0xff]
    %v47 = vld [vmem:[#allocation2 + $0x20] sm:$0xff]
    %v48 = vld [vmem:[#allocation2 + $0x28] sm:$0xff]
    %v49 = vld [vmem:[#allocation2 + $0x30] sm:$0xff]
    %v50 = vld [vmem:[#allocation2 + $0x38] sm:$0xff]
    %v51 = vld [vmem:[#allocation2 + $0x40] sm:$0xff]
    %v52 = vld [vmem:[#allocation2 + $0x48] sm:$0xff]
    %v53 = vld [vmem:[#allocation2 + $0x50] sm:$0xff]
    %v54 = vld [vmem:[#allocation2 + $0x58] sm:$0xff]
    %v55 = vld [vmem:[#allocation2 + $0x60] sm:$0xff]
    %v56 = vld [vmem:[#allocation2 + $0x68] sm:$0xff]
    %v57 = vld [vmem:[#allocation2 + $0x70] sm:$0xff]
    %v58 = vld [vmem:[#allocation2 + $0x78] sm:$0xff]
    %v59 = vld [vmem:[#allocation2 + $0x80] sm:$0xff]
    %v60 = vld [vmem:[#allocation2 + $0x88] sm:$0xff]
    %v61 = vld [vmem:[#allocation2 + $0x90] sm:$0xff]
    %v62 = vld [vmem:[#allocation2 + $0x98] sm:$0xff]
    %v63 = vld [vmem:[#allocation2 + $0xa0] sm:$0xff]
    %v64 = vld [vmem:[#allocation2 + $0xa8] sm:$0xff]
    %v65 = vld [vmem:[#allocation2 + $0xb0] sm:$0xff]
    %v66 = vld [vmem:[#allocation2 + $0xb8] sm:$0xff]
    %v67 = vld [vmem:[#allocation2 + $0xc0] sm:$0xff]
    %v68 = vld [vmem:[#allocation2 + $0xc8] sm:$0xff]
    %v69 = vld [vmem:[#allocation2 + $0xd0] sm:$0xff]
    %v70 = vld [vmem:[#allocation2 + $0xd8] sm:$0xff]
    %v71 = vld [vmem:[#allocation2 + $0xe0] sm:$0xff]
    %v72 = vld [vmem:[#allocation2 + $0xe8] sm:$0xff]
    %v73 = vld [vmem:[%s1] sm:$0x7]
    %v75 = vlaneseq
    %v76 = vshrl.u32 %v75, 7
    %v77 = vsub.s32 0, %v76
    %v78 = vrot.slane %v73, %v77
    %v79 = vlaneseq
    %v80 = vshrl.u32 %v79, 7
    %v81 = vsub.s32 1, %v80
    %v82 = vrot.slane %v73, %v81
    %v83 = vlaneseq
    %v84 = vshrl.u32 %v83, 7
    %v85 = vsub.s32 2, %v84
    %v86 = vrot.slane %v73, %v85
    %v90 = vmul.f32 %v43, %v78
    %v91 = vmul.f32 %v44, %v82
    %v92 = vmul.f32 %v45, %v86
    %v93 = vmul.f32 %v46, %v78
    %v94 = vmul.f32 %v47, %v82
    %v95 = vmul.f32 %v48, %v86
    %v96 = vmul.f32 %v49, %v78
    %v97 = vmul.f32 %v50, %v82
    %v98 = vmul.f32 %v51, %v86
    %v99 = vmul.f32 %v52, %v78
    %v100 = vmul.f32 %v53, %v82
    %v101 = vmul.f32 %v54, %v86
    %v102 = vmul.f32 %v55, %v78
    %v103 = vmul.f32 %v56, %v82
    %v104 = vmul.f32 %v57, %v86
    %v105 = vmul.f32 %v58, %v78
    %v106 = vmul.f32 %v59, %v82
    %v107 = vmul.f32 %v60, %v86
    %v108 = vmul.f32 %v61, %v78
    %v109 = vmul.f32 %v62, %v82
    %v110 = vmul.f32 %v63, %v86
    %v111 = vmul.f32 %v64, %v78
    %v112 = vmul.f32 %v65, %v82
    %v113 = vmul.f32 %v66, %v86
    %v114 = vmul.f32 %v67, %v78
    %v115 = vmul.f32 %v68, %v82
    %v116 = vmul.f32 %v69, %v86
    %v117 = vmul.f32 %v70, %v78
    %v118 = vmul.f32 %v71, %v82
    %v119 = vmul.f32 %v72, %v86
    %v120 = vld [vmem:[#allocation5] sm:$0xff]
    %v121 = vld [vmem:[#allocation5 + $0x8] sm:$0xff]
    %v122 = vld [vmem:[#allocation5 + $0x10] sm:$0xff]
    %v123 = vld [vmem:[#allocation5 + $0x18] sm:$0xff]
    %v124 = vld [vmem:[#allocation5 + $0x20] sm:$0xff]
    %v125 = vld [vmem:[#allocation5 + $0x28] sm:$0xff]
    %v126 = vld [vmem:[#allocation5 + $0x30] sm:$0xff]
    %v127 = vld [vmem:[#allocation5 + $0x38] sm:$0xff]
    %v128 = vld [vmem:[#allocation5 + $0x40] sm:$0xff]
    %v129 = vld [vmem:[#allocation5 + $0x48] sm:$0xff]
    %v130 = vld [vmem:[#allocation5 + $0x50] sm:$0xff]
    %v131 = vld [vmem:[#allocation5 + $0x58] sm:$0xff]
    %v132 = vld [vmem:[#allocation5 + $0x60] sm:$0xff]
    %v133 = vld [vmem:[#allocation5 + $0x68] sm:$0xff]
    %v134 = vld [vmem:[#allocation5 + $0x70] sm:$0xff]
    %v135 = vld [vmem:[#allocation5 + $0x78] sm:$0xff]
    %v136 = vld [vmem:[#allocation5 + $0x80] sm:$0xff]
    %v137 = vld [vmem:[#allocation5 + $0x88] sm:$0xff]
    %v138 = vld [vmem:[#allocation5 + $0x90] sm:$0xff]
    %v139 = vld [vmem:[#allocation5 + $0x98] sm:$0xff]
    %v140 = vld [vmem:[#allocation5 + $0xa0] sm:$0xff]
    %v141 = vld [vmem:[#allocation5 + $0xa8] sm:$0xff]
    %v142 = vld [vmem:[#allocation5 + $0xb0] sm:$0xff]
    %v143 = vld [vmem:[#allocation5 + $0xb8] sm:$0xff]
    %v144 = vld [vmem:[#allocation5 + $0xc0] sm:$0xff]
    %v145 = vld [vmem:[#allocation5 + $0xc8] sm:$0xff]
    %v146 = vld [vmem:[#allocation5 + $0xd0] sm:$0xff]
    %v147 = vld [vmem:[#allocation5 + $0xd8] sm:$0xff]
    %v148 = vld [vmem:[#allocation5 + $0xe0] sm:$0xff]
    %v149 = vld [vmem:[#allocation5 + $0xe8] sm:$0xff]
    %v150 = vld [vmem:[#allocation5 + $0xf0] sm:$0xff]
    %v151 = vld [vmem:[#allocation5 + $0xf8] sm:$0xff]
    %v152 = vld [vmem:[#allocation5 + $0x100] sm:$0xff]
    %v153 = vld [vmem:[#allocation5 + $0x108] sm:$0xff]
    %v154 = vld [vmem:[#allocation5 + $0x110] sm:$0xff]
    %v155 = vld [vmem:[#allocation5 + $0x118] sm:$0xff]
    %v156 = vld [vmem:[#allocation5 + $0x120] sm:$0xff]
    %v157 = vld [vmem:[#allocation5 + $0x128] sm:$0xff]
    %v158 = vld [vmem:[#allocation5 + $0x130] sm:$0xff]
    %v159 = vld [vmem:[#allocation5 + $0x138] sm:$0xff]
    %v160 = vld [vmem:[#allocation5 + $0x140] sm:$0xff]
    %v161 = vld [vmem:[#allocation5 + $0x148] sm:$0xff]
    %v162 = vld [vmem:[#allocation5 + $0x150] sm:$0xff]
    %v163 = vld [vmem:[#allocation5 + $0x158] sm:$0xff]
    %v164 = vld [vmem:[#allocation5 + $0x160] sm:$0xff]
    %v165 = vld [vmem:[#allocation5 + $0x168] sm:$0xff]
    %v166 = vld [vmem:[#allocation5 + $0x170] sm:$0xff]
    %v167 = vld [vmem:[#allocation5 + $0x178] sm:$0xff]
    %v168 = vld [vmem:[#allocation5 + $0x180] sm:$0xff]
    %v169 = vld [vmem:[#allocation5 + $0x188] sm:$0xff]
    %v170 = vld [vmem:[#allocation5 + $0x190] sm:$0xff]
    %v171 = vld [vmem:[#allocation5 + $0x198] sm:$0xff]
    %v172 = vld [vmem:[#allocation5 + $0x1a0] sm:$0xff]
    %v173 = vld [vmem:[#allocation5 + $0x1a8] sm:$0xff]
    %v174 = vld [vmem:[#allocation5 + $0x1b0] sm:$0xff]
    %v175 = vld [vmem:[#allocation5 + $0x1b8] sm:$0xff]
    %v176 = vld [vmem:[#allocation5 + $0x1c0] sm:$0xff]
    %v177 = vld [vmem:[#allocation5 + $0x1c8] sm:$0xff]
    %v178 = vld [vmem:[#allocation5 + $0x1d0] sm:$0xff]
    %v179 = vld [vmem:[#allocation5 + $0x1d8] sm:$0xff]
    %v180 = vld [vmem:[#allocation5 + $0x1e0] sm:$0xff]
    %v181 = vld [vmem:[#allocation5 + $0x1e8] sm:$0xff]
    %v182 = vld [vmem:[#allocation5 + $0x1f0] sm:$0xff]
    %v183 = vld [vmem:[#allocation5 + $0x1f8] sm:$0xff]
    %v184 = vld [vmem:[#allocation5 + $0x200] sm:$0xff]
    %v185 = vld [vmem:[#allocation5 + $0x208] sm:$0xff]
    %v186 = vld [vmem:[#allocation5 + $0x210] sm:$0xff]
    %v187 = vld [vmem:[#allocation5 + $0x218] sm:$0xff]
    %v188 = vld [vmem:[#allocation5 + $0x220] sm:$0xff]
    %v189 = vld [vmem:[#allocation5 + $0x228] sm:$0xff]
    %v190 = vld [vmem:[#allocation5 + $0x230] sm:$0xff]
    %v191 = vld [vmem:[#allocation5 + $0x238] sm:$0xff]
    %v192 = vld [vmem:[#allocation5 + $0x240] sm:$0xff]
    %v193 = vld [vmem:[#allocation5 + $0x248] sm:$0xff]
    %v194 = vld [vmem:[#allocation5 + $0x250] sm:$0xff]
    %v195 = vld [vmem:[#allocation5 + $0x258] sm:$0xff]
    %v196 = vld [vmem:[#allocation5 + $0x260] sm:$0xff]
    %v197 = vld [vmem:[#allocation5 + $0x268] sm:$0xff]
    %v198 = vld [vmem:[#allocation5 + $0x270] sm:$0xff]
    %v199 = vld [vmem:[#allocation5 + $0x278] sm:$0xff]
    %v200 = vld [vmem:[#allocation5 + $0x280] sm:$0xff]
    %v201 = vld [vmem:[#allocation5 + $0x288] sm:$0xff]
    %v202 = vld [vmem:[#allocation5 + $0x290] sm:$0xff]
    %v203 = vld [vmem:[#allocation5 + $0x298] sm:$0xff]
    %v204 = vld [vmem:[#allocation5 + $0x2a0] sm:$0xff]
    %v205 = vld [vmem:[#allocation5 + $0x2a8] sm:$0xff]
    %v206 = vld [vmem:[#allocation5 + $0x2b0] sm:$0xff]
    %v207 = vld [vmem:[#allocation5 + $0x2b8] sm:$0xff]
    %v208 = vld [vmem:[#allocation5 + $0x2c0] sm:$0xff]
    %v209 = vld [vmem:[#allocation5 + $0x2c8] sm:$0xff]
    %v210 = vld [vmem:[#allocation5 + $0x2d0] sm:$0xff]
    %v211 = vld [vmem:[#allocation5 + $0x2d8] sm:$0xff]
    %v212 = vld [vmem:[#allocation5 + $0x2e0] sm:$0xff]
    %v213 = vld [vmem:[#allocation5 + $0x2e8] sm:$0xff]
    %v214 = vld [vmem:[#allocation5 + $0x2f0] sm:$0xff]
    %v215 = vld [vmem:[#allocation5 + $0x2f8] sm:$0xff]
    %v216 = vld [vmem:[#allocation5 + $0x300] sm:$0xff]
    %v217 = vld [vmem:[#allocation5 + $0x308] sm:$0xff]
    %v218 = vld [vmem:[#allocation5 + $0x310] sm:$0xff]
    %v219 = vld [vmem:[#allocation5 + $0x318] sm:$0xff]
    %v220 = vld [vmem:[#allocation5 + $0x320] sm:$0xff]
    %v221 = vld [vmem:[#allocation5 + $0x328] sm:$0xff]
    %v222 = vld [vmem:[#allocation5 + $0x330] sm:$0xff]
    %v223 = vld [vmem:[#allocation5 + $0x338] sm:$0xff]
    %v224 = vld [vmem:[#allocation5 + $0x340] sm:$0xff]
    %v225 = vld [vmem:[#allocation5 + $0x348] sm:$0xff]
    %v226 = vld [vmem:[#allocation5 + $0x350] sm:$0xff]
    %v227 = vld [vmem:[#allocation5 + $0x358] sm:$0xff]
    %v228 = vld [vmem:[#allocation5 + $0x360] sm:$0xff]
    %v229 = vld [vmem:[#allocation5 + $0x368] sm:$0xff]
    %v230 = vld [vmem:[#allocation5 + $0x370] sm:$0xff]
    %v231 = vld [vmem:[#allocation5 + $0x378] sm:$0xff]
    %v232 = vld [vmem:[#allocation5 + $0x380] sm:$0xff]
    %v233 = vld [vmem:[#allocation5 + $0x388] sm:$0xff]
    %v234 = vld [vmem:[#allocation5 + $0x390] sm:$0xff]
    %v235 = vld [vmem:[#allocation5 + $0x398] sm:$0xff]
    %v236 = vld [vmem:[#allocation5 + $0x3a0] sm:$0xff]
    %v237 = vld [vmem:[#allocation5 + $0x3a8] sm:$0xff]
    %v238 = vld [vmem:[#allocation5 + $0x3b0] sm:$0xff]
    %v239 = vld [vmem:[#allocation5 + $0x3b8] sm:$0xff]
    %v240 = vld [vmem:[#allocation5 + $0x3c0] sm:$0xff]
    %v241 = vld [vmem:[#allocation5 + $0x3c8] sm:$0xff]
    %v242 = vld [vmem:[#allocation5 + $0x3d0] sm:$0xff]
    %v243 = vld [vmem:[#allocation5 + $0x3d8] sm:$0xff]
    %v244 = vld [vmem:[#allocation5 + $0x3e0] sm:$0xff]
    %v245 = vld [vmem:[#allocation5 + $0x3e8] sm:$0xff]
    %v246 = vld [vmem:[#allocation5 + $0x3f0] sm:$0xff]
    %v247 = vld [vmem:[#allocation5 + $0x3f8] sm:$0xff]
    %v248 = vld [vmem:[#allocation5 + $0x400] sm:$0xff]
    %v249 = vld [vmem:[#allocation5 + $0x408] sm:$0xff]
    %v250 = vld [vmem:[#allocation5 + $0x410] sm:$0xff]
    %v251 = vld [vmem:[#allocation5 + $0x418] sm:$0xff]
    %v252 = vld [vmem:[#allocation5 + $0x420] sm:$0xff]
    %v253 = vld [vmem:[#allocation5 + $0x428] sm:$0xff]
    %v254 = vld [vmem:[#allocation5 + $0x430] sm:$0xff]
    %v255 = vld [vmem:[#allocation5 + $0x438] sm:$0xff]
    %v256 = vld [vmem:[#allocation5 + $0x440] sm:$0xff]
    %v257 = vld [vmem:[#allocation5 + $0x448] sm:$0xff]
    %v258 = vld [vmem:[#allocation5 + $0x450] sm:$0xff]
    %v259 = vld [vmem:[#allocation5 + $0x458] sm:$0xff]
    %v260 = vld [vmem:[#allocation5 + $0x460] sm:$0xff]
    %v261 = vld [vmem:[#allocation5 + $0x468] sm:$0xff]
    %v262 = vld [vmem:[#allocation5 + $0x470] sm:$0xff]
    %v263 = vld [vmem:[#allocation5 + $0x478] sm:$0xff]
    %v264 = vld [vmem:[#allocation5 + $0x480] sm:$0xff]
    %v265 = vld [vmem:[#allocation5 + $0x488] sm:$0xff]
    %v266 = vld [vmem:[#allocation5 + $0x490] sm:$0xff]
    %v267 = vld [vmem:[#allocation5 + $0x498] sm:$0xff]
    %v268 = vld [vmem:[#allocation5 + $0x4a0] sm:$0xff]
    %v269 = vld [vmem:[#allocation5 + $0x4a8] sm:$0xff]
    %v270 = vld [vmem:[#allocation5 + $0x4b0] sm:$0xff]
    %v271 = vld [vmem:[#allocation5 + $0x4b8] sm:$0xff]
    %v272 = vld [vmem:[#allocation5 + $0x4c0] sm:$0xff]
    %v273 = vld [vmem:[#allocation5 + $0x4c8] sm:$0xff]
    %v274 = vld [vmem:[#allocation5 + $0x4d0] sm:$0xff]
    %v275 = vld [vmem:[#allocation5 + $0x4d8] sm:$0xff]
    %v276 = vld [vmem:[#allocation5 + $0x4e0] sm:$0xff]
    %v277 = vld [vmem:[#allocation5 + $0x4e8] sm:$0xff]
    %v278 = vld [vmem:[#allocation5 + $0x4f0] sm:$0xff]
    %v279 = vld [vmem:[#allocation5 + $0x4f8] sm:$0xff]
    %v280 = vld [vmem:[#allocation5 + $0x500] sm:$0xff]
    %v281 = vld [vmem:[#allocation5 + $0x508] sm:$0xff]
    %v282 = vld [vmem:[#allocation5 + $0x510] sm:$0xff]
    %v283 = vld [vmem:[#allocation5 + $0x518] sm:$0xff]
    %v284 = vld [vmem:[#allocation5 + $0x520] sm:$0xff]
    %v285 = vld [vmem:[#allocation5 + $0x528] sm:$0xff]
    %v286 = vld [vmem:[#allocation5 + $0x530] sm:$0xff]
    %v287 = vld [vmem:[#allocation5 + $0x538] sm:$0xff]
    %v288 = vld [vmem:[#allocation5 + $0x540] sm:$0xff]
    %v289 = vld [vmem:[#allocation5 + $0x548] sm:$0xff]
    %v290 = vld [vmem:[#allocation5 + $0x550] sm:$0xff]
    %v291 = vld [vmem:[#allocation5 + $0x558] sm:$0xff]
    %v292 = vld [vmem:[#allocation5 + $0x560] sm:$0xff]
    %v293 = vld [vmem:[#allocation5 + $0x568] sm:$0xff]
    %v294 = vld [vmem:[#allocation5 + $0x570] sm:$0xff]
    %v295 = vld [vmem:[#allocation5 + $0x578] sm:$0xff]
    %v296 = vld [vmem:[#allocation5 + $0x580] sm:$0xff]
    %v297 = vld [vmem:[#allocation5 + $0x588] sm:$0xff]
    %v298 = vld [vmem:[#allocation5 + $0x590] sm:$0xff]
    %v299 = vld [vmem:[#allocation5 + $0x598] sm:$0xff]
    %v300 = vld [vmem:[#allocation5 + $0x5a0] sm:$0xff]
    %v301 = vld [vmem:[#allocation5 + $0x5a8] sm:$0xff]
    %v302 = vld [vmem:[#allocation5 + $0x5b0] sm:$0xff]
    %v303 = vld [vmem:[#allocation5 + $0x5b8] sm:$0xff]
    %v304 = vld [vmem:[#allocation5 + $0x5c0] sm:$0xff]
    %v305 = vld [vmem:[#allocation5 + $0x5c8] sm:$0xff]
    %v306 = vld [vmem:[#allocation5 + $0x5d0] sm:$0xff]
    %v307 = vld [vmem:[#allocation5 + $0x5d8] sm:$0xff]
    %v308 = vld [vmem:[#allocation5 + $0x5e0] sm:$0xff]
    %v309 = vld [vmem:[#allocation5 + $0x5e8] sm:$0xff]
    %v310 = vld [vmem:[#allocation5 + $0x5f0] sm:$0xff]
    %v311 = vld [vmem:[#allocation5 + $0x5f8] sm:$0xff]
    %v312 = vld [vmem:[#allocation5 + $0x600] sm:$0xff]
    %v313 = vld [vmem:[#allocation5 + $0x608] sm:$0xff]
    %v314 = vld [vmem:[#allocation5 + $0x610] sm:$0xff]
    %v315 = vld [vmem:[#allocation5 + $0x618] sm:$0xff]
    %v316 = vld [vmem:[#allocation5 + $0x620] sm:$0xff]
    %v317 = vld [vmem:[#allocation5 + $0x628] sm:$0xff]
    %v318 = vld [vmem:[#allocation5 + $0x630] sm:$0xff]
    %v319 = vld [vmem:[#allocation5 + $0x638] sm:$0xff]
    %v320 = vld [vmem:[#allocation5 + $0x640] sm:$0xff]
    %v321 = vld [vmem:[#allocation5 + $0x648] sm:$0xff]
    %v322 = vld [vmem:[#allocation5 + $0x650] sm:$0xff]
    %v323 = vld [vmem:[#allocation5 + $0x658] sm:$0xff]
    %v324 = vld [vmem:[#allocation5 + $0x660] sm:$0xff]
    %v325 = vld [vmem:[#allocation5 + $0x668] sm:$0xff]
    %v326 = vld [vmem:[#allocation5 + $0x670] sm:$0xff]
    %v327 = vld [vmem:[#allocation5 + $0x678] sm:$0xff]
    %v328 = vld [vmem:[#allocation5 + $0x680] sm:$0xff]
    %v329 = vld [vmem:[#allocation5 + $0x688] sm:$0xff]
    %v330 = vld [vmem:[#allocation5 + $0x690] sm:$0xff]
    %v331 = vld [vmem:[#allocation5 + $0x698] sm:$0xff]
    %v332 = vld [vmem:[#allocation5 + $0x6a0] sm:$0xff]
    %v333 = vld [vmem:[#allocation5 + $0x6a8] sm:$0xff]
    %v334 = vld [vmem:[#allocation5 + $0x6b0] sm:$0xff]
    %v335 = vld [vmem:[#allocation5 + $0x6b8] sm:$0xff]
    %v336 = vld [vmem:[#allocation5 + $0x6c0] sm:$0xff]
    %v337 = vld [vmem:[#allocation5 + $0x6c8] sm:$0xff]
    %v338 = vld [vmem:[#allocation5 + $0x6d0] sm:$0xff]
    %v339 = vld [vmem:[#allocation5 + $0x6d8] sm:$0xff]
    %v340 = vld [vmem:[#allocation5 + $0x6e0] sm:$0xff]
    %v341 = vld [vmem:[#allocation5 + $0x6e8] sm:$0xff]
    %v342 = vld [vmem:[#allocation5 + $0x6f0] sm:$0xff]
    %v343 = vld [vmem:[#allocation5 + $0x6f8] sm:$0xff]
    %v344 = vld [vmem:[#allocation5 + $0x700] sm:$0xff]
    %v345 = vld [vmem:[#allocation5 + $0x708] sm:$0xff]
    %v346 = vld [vmem:[#allocation5 + $0x710] sm:$0xff]
    %v347 = vld [vmem:[#allocation5 + $0x718] sm:$0xff]
    %v348 = vld [vmem:[#allocation5 + $0x720] sm:$0xff]
    %v349 = vld [vmem:[#allocation5 + $0x728] sm:$0xff]
    %v350 = vld [vmem:[#allocation5 + $0x730] sm:$0xff]
    %v351 = vld [vmem:[#allocation5 + $0x738] sm:$0xff]
    %v352 = vld [vmem:[#allocation5 + $0x740] sm:$0xff]
    %v353 = vld [vmem:[#allocation5 + $0x748] sm:$0xff]
    %v354 = vld [vmem:[#allocation5 + $0x750] sm:$0xff]
    %v355 = vld [vmem:[#allocation5 + $0x758] sm:$0xff]
    %v356 = vld [vmem:[#allocation5 + $0x760] sm:$0xff]
    %v357 = vld [vmem:[#allocation5 + $0x768] sm:$0xff]
    %v358 = vld [vmem:[#allocation5 + $0x770] sm:$0xff]
    %v359 = vld [vmem:[#allocation5 + $0x778] sm:$0xff]
    %v360 = vld [vmem:[#allocation5 + $0x780] sm:$0xff]
    %v361 = vld [vmem:[#allocation5 + $0x788] sm:$0xff]
    %v362 = vld [vmem:[#allocation5 + $0x790] sm:$0xff]
    %v363 = vld [vmem:[#allocation5 + $0x798] sm:$0xff]
    %v364 = vld [vmem:[#allocation5 + $0x7a0] sm:$0xff]
    %v365 = vld [vmem:[#allocation5 + $0x7a8] sm:$0xff]
    %v366 = vld [vmem:[#allocation5 + $0x7b0] sm:$0xff]
    %v367 = vld [vmem:[#allocation5 + $0x7b8] sm:$0xff]
    %v368 = vld [vmem:[#allocation5 + $0x7c0] sm:$0xff]
    %v369 = vld [vmem:[#allocation5 + $0x7c8] sm:$0xff]
    %v370 = vld [vmem:[#allocation5 + $0x7d0] sm:$0xff]
    %v371 = vld [vmem:[#allocation5 + $0x7d8] sm:$0xff]
    %vm372 = vcmask 261120
    %v374 = vsel %vm372, %v92, 0
    %v377 = vsel %vm372, %v95, 0
    %v380 = vsel %vm372, %v98, 0
    %v383 = vsel %vm372, %v101, 0
    %v386 = vsel %vm372, %v104, 0
    %v389 = vsel %vm372, %v107, 0
    %v392 = vsel %vm372, %v110, 0
    %v395 = vsel %vm372, %v113, 0
    %v398 = vsel %vm372, %v116, 0
    %v401 = vsel %vm372, %v119, 0
    %403 = vmatprep.subr.mxu0 %v121
    %404 = vmatpush1.msra.mxu0 %v120
    %405 = vmatprep.subr.mxu0 %v128
    %406 = vmatpush1.msra.mxu0 %v127
    %407 = vmatprep.subr.mxu0 %v135
    %408 = vmatpush1.msra.mxu0 %v134
    %409 = vmatprep.subr.mxu0 %v142
    %410 = vmatpush1.msra.mxu0 %v141
    %411 = vmatprep.subr.mxu0 %v149
    %412 = vmatpush1.msra.mxu0 %v148
    %413 = vmatprep.subr.mxu0 %v156
    %414 = vmatpush1.msra.mxu0 %v155
    %415 = vmatprep.subr.mxu0 %v163
    %416 = vmatpush1.msra.mxu0 %v162
    %417 = vmatprep.subr.mxu0 %v170
    %418 = vmatpush1.msra.mxu0 %v169
    %419 = vmatprep.subr.mxu0 %v177
    %420 = vmatpush1.msra.mxu0 %v176
    %421 = vmatprep.subr.mxu0 %v184
    %422 = vmatpush1.msra.mxu0 %v183
    %423 = vmatprep.subr.mxu0 %v191
    %424 = vmatpush1.msra.mxu0 %v190
    %425 = vmatprep.subr.mxu0 %v198
    %426 = vmatpush1.msra.mxu0 %v197
    %427 = vmatprep.subr.mxu0 %v205
    %428 = vmatpush1.msra.mxu0 %v204
    %429 = vmatprep.subr.mxu0 %v212
    %430 = vmatpush1.msra.mxu0 %v211
    %431 = vmatprep.subr.mxu0 %v219
    %432 = vmatpush1.msra.mxu0 %v218
    %433 = vmatprep.subr.mxu0 %v226
    %434 = vmatpush1.msra.mxu0 %v225
    %435 = vmatprep.subr.mxu0 %v233
    %436 = vmatpush1.msra.mxu0 %v232
    %437 = vmatprep.subr.mxu0 %v240
    %438 = vmatpush1.msra.mxu0 %v239
    %439 = vmatprep.subr.mxu0 %v247
    %440 = vmatpush1.msra.mxu0 %v246
    %441 = vmatprep.subr.mxu0 %v254
    %442 = vmatpush1.msra.mxu0 %v253
    %443 = vmatprep.subr.mxu0 %v261
    %444 = vmatpush1.msra.mxu0 %v260
    %445 = vmatprep.subr.mxu0 %v268
    %446 = vmatpush1.msra.mxu0 %v267
    %447 = vmatprep.subr.mxu0 %v275
    %448 = vmatpush1.msra.mxu0 %v274
    %449 = vmatprep.subr.mxu0 %v282
    %450 = vmatpush1.msra.mxu0 %v281
    %451 = vmatprep.subr.mxu0 %v289
    %452 = vmatpush1.msra.mxu0 %v288
    %453 = vmatprep.subr.mxu0 %v296
    %454 = vmatpush1.msra.mxu0 %v295
    %455 = vmatprep.subr.mxu0 %v303
    %456 = vmatpush1.msra.mxu0 %v302
    %457 = vmatprep.subr.mxu0 %v310
    %458 = vmatpush1.msra.mxu0 %v309
    %459 = vmatprep.subr.mxu0 %v317
    %460 = vmatpush1.msra.mxu0 %v316
    %461 = vmatprep.subr.mxu0 %v324
    %462 = vmatpush1.msra.mxu0 %v323
    %463 = vmatprep.subr.mxu0 %v331
    %464 = vmatpush1.msra.mxu0 %v330
    %465 = vmatprep.subr.mxu0 %v338
    %466 = vmatpush1.msra.mxu0 %v337
    %467 = vmatprep.mubr.f32.mxu0 %v91
    %468 = vmatmul.mubr.f32.gmra.mrb[0].mxu0 %v90
    %v469 = vpop.f32.mrb[0].mxu0
    %v470 = vadd.f32 0.0, %v469
    %v471 = vpop.f32.mrb[0].mxu0
    %v472 = vadd.f32 0.0, %v471
    %473 = vmatprep.mubr.f32.mxu0 %v94
    %474 = vmatmul.mubr.f32.gmra.mrb[0].mxu0 %v93
    %v475 = vpop.f32.mrb[0].mxu0
    %v476 = vadd.f32 0.0, %v475
    %v477 = vpop.f32.mrb[0].mxu0
    %v478 = vadd.f32 0.0, %v477
    %479 = vmatprep.mubr.f32.mxu0 %v97
    %480 = vmatmul.mubr.f32.gmra.mrb[0].mxu0 %v96
    %v481 = vpop.f32.mrb[0].mxu0
    %v482 = vadd.f32 0.0, %v481
    %v483 = vpop.f32.mrb[0].mxu0
    %v484 = vadd.f32 0.0, %v483
    %485 = vmatprep.mubr.f32.mxu0 %v100
    %486 = vmatmul.mubr.f32.gmra.mrb[0].mxu0 %v99
    %v487 = vpop.f32.mrb[0].mxu0
    %v488 = vadd.f32 0.0, %v487
    %v489 = vpop.f32.mrb[0].mxu0
    %v490 = vadd.f32 0.0, %v489
    %491 = vmatprep.mubr.f32.mxu0 %v103
    %492 = vmatmul.mubr.f32.gmra.mrb[0].mxu0 %v102
    %v493 = vpop.f32.mrb[0].mxu0
    %v494 = vadd.f32 0.0, %v493
    %v495 = vpop.f32.mrb[0].mxu0
    %v496 = vadd.f32 0.0, %v495
    %497 = vmatprep.mubr.f32.mxu0 %v106
    %498 = vmatmul.mubr.f32.gmra.mrb[0].mxu0 %v105
    %v499 = vpop.f32.mrb[0].mxu0
    %v500 = vadd.f32 0.0, %v499
    %v501 = vpop.f32.mrb[0].mxu0
    %v502 = vadd.f32 0.0, %v501
    %503 = vmatprep.mubr.f32.mxu0 %v109
    %504 = vmatmul.mubr.f32.gmra.mrb[0].mxu0 %v108
    %v505 = vpop.f32.mrb[0].mxu0
    %v506 = vadd.f32 0.0, %v505
    %v507 = vpop.f32.mrb[0].mxu0
    %v508 = vadd.f32 0.0, %v507
    %509 = vmatprep.mubr.f32.mxu0 %v112
    %510 = vmatmul.mubr.f32.gmra.mrb[0].mxu0 %v111
    %v511 = vpop.f32.mrb[0].mxu0
    %v512 = vadd.f32 0.0, %v511
    %v513 = vpop.f32.mrb[0].mxu0
    %v514 = vadd.f32 0.0, %v513
    %515 = vmatprep.mubr.f32.mxu0 %v115
    %516 = vmatmul.mubr.f32.gmra.mrb[0].mxu0 %v114
    %v517 = vpop.f32.mrb[0].mxu0
    %v518 = vadd.f32 0.0, %v517
    %v519 = vpop.f32.mrb[0].mxu0
    %v520 = vadd.f32 0.0, %v519
    %521 = vmatprep.mubr.f32.mxu0 %v118
    %522 = vmatmul.mubr.f32.gmra.mrb[0].mxu0 %v117
    %v523 = vpop.f32.mrb[0].mxu0
    %v524 = vadd.f32 0.0, %v523
    %v525 = vpop.f32.mrb[0].mxu0
    %v526 = vadd.f32 0.0, %v525
    %527 = vdwg.mxu0
    %528 = vmatprep.subr.mxu0 %v345
    %529 = vmatpush1.msra.mxu0 %v344
    %530 = vmatprep.subr.mxu0 %v352
    %531 = vmatpush1.msra.mxu0 %v351
    %532 = vmatprep.subr.mxu0 %v359
    %533 = vmatpush1.msra.mxu0 %v358
    %534 = vmatprep.subr.mxu0 %v366
    %535 = vmatpush1.msra.mxu0 %v365
    %536 = vmatprep.subr.mxu0 0.0
    %537 = vmatpush1.msra.mxu0 0.0
    %538 = vmatprep.subr.mxu0 0.0
    %539 = vmatpush1.msra.mxu0 0.0
    %540 = vmatprep.subr.mxu0 0.0
    %541 = vmatpush1.msra.mxu0 0.0
    %542 = vmatprep.subr.mxu0 0.0
    %543 = vmatpush1.msra.mxu0 0.0
    %544 = vmatprep.subr.mxu0 0.0
    %545 = vmatpush1.msra.mxu0 0.0
    %546 = vmatprep.subr.mxu0 0.0
    %547 = vmatpush1.msra.mxu0 0.0
    %548 = vmatprep.subr.mxu0 0.0
    %549 = vmatpush1.msra.mxu0 0.0
    %550 = vmatprep.subr.mxu0 0.0
    %551 = vmatpush1.msra.mxu0 0.0
    %552 = vmatprep.subr.mxu0 0.0
    %553 = vmatpush1.msra.mxu0 0.0
    %554 = vmatprep.subr.mxu0 0.0
    %555 = vmatpush1.msra.mxu0 0.0
    %556 = vmatprep.subr.mxu0 0.0
    %557 = vmatpush1.msra.mxu0 0.0
    %558 = vmatprep.subr.mxu0 0.0
    %559 = vmatpush1.msra.mxu0 0.0
    %560 = vmatprep.subr.mxu0 0.0
    %561 = vmatpush1.msra.mxu0 0.0
    %562 = vmatprep.subr.mxu0 0.0
    %563 = vmatpush1.msra.mxu0 0.0
    %564 = vmatprep.subr.mxu0 0.0
    %565 = vmatpush1.msra.mxu0 0.0
    %566 = vmatprep.subr.mxu0 0.0
    %567 = vmatpush1.msra.mxu0 0.0
    %568 = vmatprep.subr.mxu0 0.0
    %569 = vmatpush1.msra.mxu0 0.0
    %570 = vmatprep.subr.mxu0 0.0
    %571 = vmatpush1.msra.mxu0 0.0
    %572 = vmatprep.subr.mxu0 0.0
    %573 = vmatpush1.msra.mxu0 0.0
    %574 = vmatprep.subr.mxu0 0.0
    %575 = vmatpush1.msra.mxu0 0.0
    %576 = vmatprep.subr.mxu0 0.0
    %577 = vmatpush1.msra.mxu0 0.0
    %578 = vmatprep.subr.mxu0 0.0
    %579 = vmatpush1.msra.mxu0 0.0
    %580 = vmatprep.subr.mxu0 0.0
    %581 = vmatpush1.msra.mxu0 0.0
    %582 = vmatprep.subr.mxu0 0.0
    %583 = vmatpush1.msra.mxu0 0.0
    %584 = vmatprep.subr.mxu0 0.0
    %585 = vmatpush1.msra.mxu0 0.0
    %586 = vmatprep.subr.mxu0 0.0
    %587 = vmatpush1.msra.mxu0 0.0
    %588 = vmatprep.subr.mxu0 0.0
    %589 = vmatpush1.msra.mxu0 0.0
    %590 = vmatprep.subr.mxu0 0.0
    %591 = vmatpush1.msra.mxu0 0.0
    %592 = vmatprep.mubr.f32.mxu0 0.0
    %593 = vmatmul.mubr.f32.gmra.mrb[0].mxu0 %v374
    %v594 = vpop.f32.mrb[0].mxu0
    %v595 = vadd.f32 %v470, %v594
    %v596 = vpop.f32.mrb[0].mxu0
    %v597 = vadd.f32 %v472, %v596
    %598 = vmatprep.mubr.f32.mxu0 0.0
    %599 = vmatmul.mubr.f32.gmra.mrb[0].mxu0 %v377
    %v600 = vpop.f32.mrb[0].mxu0
    %v601 = vadd.f32 %v476, %v600
    %v602 = vpop.f32.mrb[0].mxu0
    %v603 = vadd.f32 %v478, %v602
    %604 = vmatprep.mubr.f32.mxu0 0.0
    %605 = vmatmul.mubr.f32.gmra.mrb[0].mxu0 %v380
    %v606 = vpop.f32.mrb[0].mxu0
    %v607 = vadd.f32 %v482, %v606
    %v608 = vpop.f32.mrb[0].mxu0
    %v609 = vadd.f32 %v484, %v608
    %610 = vmatprep.mubr.f32.mxu0 0.0
    %611 = vmatmul.mubr.f32.gmra.mrb[0].mxu0 %v383
    %v612 = vpop.f32.mrb[0].mxu0
    %v613 = vadd.f32 %v488, %v612
    %v614 = vpop.f32.mrb[0].mxu0
    %v615 = vadd.f32 %v490, %v614
    %616 = vmatprep.mubr.f32.mxu0 0.0
    %617 = vmatmul.mubr.f32.gmra.mrb[0].mxu0 %v386
    %v618 = vpop.f32.mrb[0].mxu0
    %v619 = vadd.f32 %v494, %v618
    %v620 = vpop.f32.mrb[0].mxu0
    %v621 = vadd.f32 %v496, %v620
    %622 = vmatprep.mubr.f32.mxu0 0.0
    %623 = vmatmul.mubr.f32.gmra.mrb[0].mxu0 %v389
    %v624 = vpop.f32.mrb[0].mxu0
    %v625 = vadd.f32 %v500, %v624
    %v626 = vpop.f32.mrb[0].mxu0
    %v627 = vadd.f32 %v502, %v626
    %628 = vmatprep.mubr.f32.mxu0 0.0
    %629 = vmatmul.mubr.f32.gmra.mrb[0].mxu0 %v392
    %v630 = vpop.f32.mrb[0].mxu0
    %v631 = vadd.f32 %v506, %v630
    %v632 = vpop.f32.mrb[0].mxu0
    %v633 = vadd.f32 %v508, %v632
    %634 = vmatprep.mubr.f32.mxu0 0.0
    %635 = vmatmul.mubr.f32.gmra.mrb[0].mxu0 %v395
    %v636 = vpop.f32.mrb[0].mxu0
    %v637 = vadd.f32 %v512, %v636
    %v638 = vpop.f32.mrb[0].mxu0
    %v639 = vadd.f32 %v514, %v638
    %640 = vmatprep.mubr.f32.mxu0 0.0
    %641 = vmatmul.mubr.f32.gmra.mrb[0].mxu0 %v398
    %v642 = vpop.f32.mrb[0].mxu0
    %v643 = vadd.f32 %v518, %v642
    %v644 = vpop.f32.mrb[0].mxu0
    %v645 = vadd.f32 %v520, %v644
    %646 = vmatprep.mubr.f32.mxu0 0.0
    %647 = vmatmul.mubr.f32.gmra.mrb[0].mxu0 %v401
    %v648 = vpop.f32.mrb[0].mxu0
    %v649 = vadd.f32 %v524, %v648
    %v650 = vpop.f32.mrb[0].mxu0
    %v651 = vadd.f32 %v526, %v650
    %652 = vdwg.mxu0
    %653 = vmatprep.subr.mxu0 %v123
    %654 = vmatpush1.msra.mxu0 %v122
    %655 = vmatprep.subr.mxu0 %v130
    %656 = vmatpush1.msra.mxu0 %v129
    %657 = vmatprep.subr.mxu0 %v137
    %658 = vmatpush1.msra.mxu0 %v136
    %659 = vmatprep.subr.mxu0 %v144
    %660 = vmatpush1.msra.mxu0 %v143
    %661 = vmatprep.subr.mxu0 %v151
    %662 = vmatpush1.msra.mxu0 %v150
    %663 = vmatprep.subr.mxu0 %v158
    %664 = vmatpush1.msra.mxu0 %v157
    %665 = vmatprep.subr.mxu0 %v165
    %666 = vmatpush1.msra.mxu0 %v164
    %667 = vmatprep.subr.mxu0 %v172
    %668 = vmatpush1.msra.mxu0 %v171
    %669 = vmatprep.subr.mxu0 %v179
    %670 = vmatpush1.msra.mxu0 %v178
    %671 = vmatprep.subr.mxu0 %v186
    %672 = vmatpush1.msra.mxu0 %v185
    %673 = vmatprep.subr.mxu0 %v193
    %674 = vmatpush1.msra.mxu0 %v192
    %675 = vmatprep.subr.mxu0 %v200
    %676 = vmatpush1.msra.mxu0 %v199
    %677 = vmatprep.subr.mxu0 %v207
    %678 = vmatpush1.msra.mxu0 %v206
    %679 = vmatprep.subr.mxu0 %v214
    %680 = vmatpush1.msra.mxu0 %v213
    %681 = vmatprep.subr.mxu0 %v221
    %682 = vmatpush1.msra.mxu0 %v220
    %683 = vmatprep.subr.mxu0 %v228
    %684 = vmatpush1.msra.mxu0 %v227
    %685 = vmatprep.subr.mxu0 %v235
    %686 = vmatpush1.msra.mxu0 %v234
    %687 = vmatprep.subr.mxu0 %v242
    %688 = vmatpush1.msra.mxu0 %v241
    %689 = vmatprep.subr.mxu0 %v249
    %690 = vmatpush1.msra.mxu0 %v248
    %691 = vmatprep.subr.mxu0 %v256
    %692 = vmatpush1.msra.mxu0 %v255
    %693 = vmatprep.subr.mxu0 %v263
    %694 = vmatpush1.msra.mxu0 %v262
    %695 = vmatprep.subr.mxu0 %v270
    %696 = vmatpush1.msra.mxu0 %v269
    %697 = vmatprep.subr.mxu0 %v277
    %698 = vmatpush1.msra.mxu0 %v276
    %699 = vmatprep.subr.mxu0 %v284
    %700 = vmatpush1.msra.mxu0 %v283
    %701 = vmatprep.subr.mxu0 %v291
    %702 = vmatpush1.msra.mxu0 %v290
    %703 = vmatprep.subr.mxu0 %v298
    %704 = vmatpush1.msra.mxu0 %v297
    %705 = vmatprep.subr.mxu0 %v305
    %706 = vmatpush1.msra.mxu0 %v304
    %707 = vmatprep.subr.mxu0 %v312
    %708 = vmatpush1.msra.mxu0 %v311
    %709 = vmatprep.subr.mxu0 %v319
    %710 = vmatpush1.msra.mxu0 %v318
    %711 = vmatprep.subr.mxu0 %v326
    %712 = vmatpush1.msra.mxu0 %v325
    %713 = vmatprep.subr.mxu0 %v333
    %714 = vmatpush1.msra.mxu0 %v332
    %715 = vmatprep.subr.mxu0 %v340
    %716 = vmatpush1.msra.mxu0 %v339
    %717 = vmatprep.mubr.f32.mxu0 %v91
    %718 = vmatmul.mubr.f32.gmra.mrb[0].mxu0 %v90
    %v719 = vpop.f32.mrb[0].mxu0
    %v720 = vadd.f32 0.0, %v719
    %v721 = vpop.f32.mrb[0].mxu0
    %v722 = vadd.f32 0.0, %v721
    %723 = vmatprep.mubr.f32.mxu0 %v94
    %724 = vmatmul.mubr.f32.gmra.mrb[0].mxu0 %v93
    %v725 = vpop.f32.mrb[0].mxu0
    %v726 = vadd.f32 0.0, %v725
    %v727 = vpop.f32.mrb[0].mxu0
    %v728 = vadd.f32 0.0, %v727
    %729 = vmatprep.mubr.f32.mxu0 %v97
    %730 = vmatmul.mubr.f32.gmra.mrb[0].mxu0 %v96
    %v731 = vpop.f32.mrb[0].mxu0
    %v732 = vadd.f32 0.0, %v731
    %v733 = vpop.f32.mrb[0].mxu0
    %v734 = vadd.f32 0.0, %v733
    %735 = vmatprep.mubr.f32.mxu0 %v100
    %736 = vmatmul.mubr.f32.gmra.mrb[0].mxu0 %v99
    %v737 = vpop.f32.mrb[0].mxu0
    %v738 = vadd.f32 0.0, %v737
    %v739 = vpop.f32.mrb[0].mxu0
    %v740 = vadd.f32 0.0, %v739
    %741 = vmatprep.mubr.f32.mxu0 %v103
    %742 = vmatmul.mubr.f32.gmra.mrb[0].mxu0 %v102
    %v743 = vpop.f32.mrb[0].mxu0
    %v744 = vadd.f32 0.0, %v743
    %v745 = vpop.f32.mrb[0].mxu0
    %v746 = vadd.f32 0.0, %v745
    %747 = vmatprep.mubr.f32.mxu0 %v106
    %748 = vmatmul.mubr.f32.gmra.mrb[0].mxu0 %v105
    %v749 = vpop.f32.mrb[0].mxu0
    %v750 = vadd.f32 0.0, %v749
    %v751 = vpop.f32.mrb[0].mxu0
    %v752 = vadd.f32 0.0, %v751
    %753 = vmatprep.mubr.f32.mxu0 %v109
    %754 = vmatmul.mubr.f32.gmra.mrb[0].mxu0 %v108
    %v755 = vpop.f32.mrb[0].mxu0
    %v756 = vadd.f32 0.0, %v755
    %v757 = vpop.f32.mrb[0].mxu0
    %v758 = vadd.f32 0.0, %v757
    %759 = vmatprep.mubr.f32.mxu0 %v112
    %760 = vmatmul.mubr.f32.gmra.mrb[0].mxu0 %v111
    %v761 = vpop.f32.mrb[0].mxu0
    %v762 = vadd.f32 0.0, %v761
    %v763 = vpop.f32.mrb[0].mxu0
    %v764 = vadd.f32 0.0, %v763
    %765 = vmatprep.mubr.f32.mxu0 %v115
    %766 = vmatmul.mubr.f32.gmra.mrb[0].mxu0 %v114
    %v767 = vpop.f32.mrb[0].mxu0
    %v768 = vadd.f32 0.0, %v767
    %v769 = vpop.f32.mrb[0].mxu0
    %v770 = vadd.f32 0.0, %v769
    %771 = vmatprep.mubr.f32.mxu0 %v118
    %772 = vmatmul.mubr.f32.gmra.mrb[0].mxu0 %v117
    %v773 = vpop.f32.mrb[0].mxu0
    %v774 = vadd.f32 0.0, %v773
    %v775 = vpop.f32.mrb[0].mxu0
    %v776 = vadd.f32 0.0, %v775
    %777 = vdwg.mxu0
    %778 = vmatprep.subr.mxu0 %v347
    %779 = vmatpush1.msra.mxu0 %v346
    %780 = vmatprep.subr.mxu0 %v354
    %781 = vmatpush1.msra.mxu0 %v353
    %782 = vmatprep.subr.mxu0 %v361
    %783 = vmatpush1.msra.mxu0 %v360
    %784 = vmatprep.subr.mxu0 %v368
    %785 = vmatpush1.msra.mxu0 %v367
    %786 = vmatprep.subr.mxu0 0.0
    %787 = vmatpush1.msra.mxu0 0.0
    %788 = vmatprep.subr.mxu0 0.0
    %789 = vmatpush1.msra.mxu0 0.0
    %790 = vmatprep.subr.mxu0 0.0
    %791 = vmatpush1.msra.mxu0 0.0
    %792 = vmatprep.subr.mxu0 0.0
    %793 = vmatpush1.msra.mxu0 0.0
    %794 = vmatprep.subr.mxu0 0.0
    %795 = vmatpush1.msra.mxu0 0.0
    %796 = vmatprep.subr.mxu0 0.0
    %797 = vmatpush1.msra.mxu0 0.0
    %798 = vmatprep.subr.mxu0 0.0
    %799 = vmatpush1.msra.mxu0 0.0
    %800 = vmatprep.subr.mxu0 0.0
    %801 = vmatpush1.msra.mxu0 0.0
    %802 = vmatprep.subr.mxu0 0.0
    %803 = vmatpush1.msra.mxu0 0.0
    %804 = vmatprep.subr.mxu0 0.0
    %805 = vmatpush1.msra.mxu0 0.0
    %806 = vmatprep.subr.mxu0 0.0
    %807 = vmatpush1.msra.mxu0 0.0
    %808 = vmatprep.subr.mxu0 0.0
    %809 = vmatpush1.msra.mxu0 0.0
    %810 = vmatprep.subr.mxu0 0.0
    %811 = vmatpush1.msra.mxu0 0.0
    %812 = vmatprep.subr.mxu0 0.0
    %813 = vmatpush1.msra.mxu0 0.0
    %814 = vmatprep.subr.mxu0 0.0
    %815 = vmatpush1.msra.mxu0 0.0
    %816 = vmatprep.subr.mxu0 0.0
    %817 = vmatpush1.msra.mxu0 0.0
    %818 = vmatprep.subr.mxu0 0.0
    %819 = vmatpush1.msra.mxu0 0.0
    %820 = vmatprep.subr.mxu0 0.0
    %821 = vmatpush1.msra.mxu0 0.0
    %822 = vmatprep.subr.mxu0 0.0
    %823 = vmatpush1.msra.mxu0 0.0
    %824 = vmatprep.subr.mxu0 0.0
    %825 = vmatpush1.msra.mxu0 0.0
    %826 = vmatprep.subr.mxu0 0.0
    %827 = vmatpush1.msra.mxu0 0.0
    %828 = vmatprep.subr.mxu0 0.0
    %829 = vmatpush1.msra.mxu0 0.0
    %830 = vmatprep.subr.mxu0 0.0
    %831 = vmatpush1.msra.mxu0 0.0
    %832 = vmatprep.subr.mxu0 0.0
    %833 = vmatpush1.msra.mxu0 0.0
    %834 = vmatprep.subr.mxu0 0.0
    %835 = vmatpush1.msra.mxu0 0.0
    %836 = vmatprep.subr.mxu0 0.0
    %837 = vmatpush1.msra.mxu0 0.0
    %838 = vmatprep.subr.mxu0 0.0
    %839 = vmatpush1.msra.mxu0 0.0
    %840 = vmatprep.subr.mxu0 0.0
    %841 = vmatpush1.msra.mxu0 0.0
    %842 = vmatprep.mubr.f32.mxu0 0.0
    %843 = vmatmul.mubr.f32.gmra.mrb[0].mxu0 %v374
    %v844 = vpop.f32.mrb[0].mxu0
    %v845 = vadd.f32 %v720, %v844
    %v846 = vpop.f32.mrb[0].mxu0
    %v847 = vadd.f32 %v722, %v846
    %848 = vmatprep.mubr.f32.mxu0 0.0
    %849 = vmatmul.mubr.f32.gmra.mrb[0].mxu0 %v377
    %v850 = vpop.f32.mrb[0].mxu0
    %v851 = vadd.f32 %v726, %v850
    %v852 = vpop.f32.mrb[0].mxu0
    %v853 = vadd.f32 %v728, %v852
    %854 = vmatprep.mubr.f32.mxu0 0.0
    %855 = vmatmul.mubr.f32.gmra.mrb[0].mxu0 %v380
    %v856 = vpop.f32.mrb[0].mxu0
    %v857 = vadd.f32 %v732, %v856
    %v858 = vpop.f32.mrb[0].mxu0
    %v859 = vadd.f32 %v734, %v858
    %860 = vmatprep.mubr.f32.mxu0 0.0
    %861 = vmatmul.mubr.f32.gmra.mrb[0].mxu0 %v383
    %v862 = vpop.f32.mrb[0].mxu0
    %v863 = vadd.f32 %v738, %v862
    %v864 = vpop.f32.mrb[0].mxu0
    %v865 = vadd.f32 %v740, %v864
    %866 = vmatprep.mubr.f32.mxu0 0.0
    %867 = vmatmul.mubr.f32.gmra.mrb[0].mxu0 %v386
    %v868 = vpop.f32.mrb[0].mxu0
    %v869 = vadd.f32 %v744, %v868
    %v870 = vpop.f32.mrb[0].mxu0
    %v871 = vadd.f32 %v746, %v870
    %872 = vmatprep.mubr.f32.mxu0 0.0
    %873 = vmatmul.mubr.f32.gmra.mrb[0].mxu0 %v389
    %v874 = vpop.f32.mrb[0].mxu0
    %v875 = vadd.f32 %v750, %v874
    %v876 = vpop.f32.mrb[0].mxu0
    %v877 = vadd.f32 %v752, %v876
    %878 = vmatprep.mubr.f32.mxu0 0.0
    %879 = vmatmul.mubr.f32.gmra.mrb[0].mxu0 %v392
    %v880 = vpop.f32.mrb[0].mxu0
    %v881 = vadd.f32 %v756, %v880
    %v882 = vpop.f32.mrb[0].mxu0
    %v883 = vadd.f32 %v758, %v882
    %884 = vmatprep.mubr.f32.mxu0 0.0
    %885 = vmatmul.mubr.f32.gmra.mrb[0].mxu0 %v395
    %v886 = vpop.f32.mrb[0].mxu0
    %v887 = vadd.f32 %v762, %v886
    %v888 = vpop.f32.mrb[0].mxu0
    %v889 = vadd.f32 %v764, %v888
    %890 = vmatprep.mubr.f32.mxu0 0.0
    %891 = vmatmul.mubr.f32.gmra.mrb[0].mxu0 %v398
    %v892 = vpop.f32.mrb[0].mxu0
    %v893 = vadd.f32 %v768, %v892
    %v894 = vpop.f32.mrb[0].mxu0
    %v895 = vadd.f32 %v770, %v894
    %896 = vmatprep.mubr.f32.mxu0 0.0
    %897 = vmatmul.mubr.f32.gmra.mrb[0].mxu0 %v401
    %v898 = vpop.f32.mrb[0].mxu0
    %v899 = vadd.f32 %v774, %v898
    %v900 = vpop.f32.mrb[0].mxu0
    %v901 = vadd.f32 %v776, %v900
    %902 = vdwg.mxu0
    %903 = vmatprep.subr.mxu0 %v125
    %904 = vmatpush1.msra.mxu0 %v124
    %905 = vmatprep.subr.mxu0 %v132
    %906 = vmatpush1.msra.mxu0 %v131
    %907 = vmatprep.subr.mxu0 %v139
    %908 = vmatpush1.msra.mxu0 %v138
    %909 = vmatprep.subr.mxu0 %v146
    %910 = vmatpush1.msra.mxu0 %v145
    %911 = vmatprep.subr.mxu0 %v153
    %912 = vmatpush1.msra.mxu0 %v152
    %913 = vmatprep.subr.mxu0 %v160
    %914 = vmatpush1.msra.mxu0 %v159
    %915 = vmatprep.subr.mxu0 %v167
    %916 = vmatpush1.msra.mxu0 %v166
    %917 = vmatprep.subr.mxu0 %v174
    %918 = vmatpush1.msra.mxu0 %v173
    %919 = vmatprep.subr.mxu0 %v181
    %920 = vmatpush1.msra.mxu0 %v180
    %921 = vmatprep.subr.mxu0 %v188
    %922 = vmatpush1.msra.mxu0 %v187
    %923 = vmatprep.subr.mxu0 %v195
    %924 = vmatpush1.msra.mxu0 %v194
    %925 = vmatprep.subr.mxu0 %v202
    %926 = vmatpush1.msra.mxu0 %v201
    %927 = vmatprep.subr.mxu0 %v209
    %928 = vmatpush1.msra.mxu0 %v208
    %929 = vmatprep.subr.mxu0 %v216
    %930 = vmatpush1.msra.mxu0 %v215
    %931 = vmatprep.subr.mxu0 %v223
    %932 = vmatpush1.msra.mxu0 %v222
    %933 = vmatprep.subr.mxu0 %v230
    %934 = vmatpush1.msra.mxu0 %v229
    %935 = vmatprep.subr.mxu0 %v237
    %936 = vmatpush1.msra.mxu0 %v236
    %937 = vmatprep.subr.mxu0 %v244
    %938 = vmatpush1.msra.mxu0 %v243
    %939 = vmatprep.subr.mxu0 %v251
    %940 = vmatpush1.msra.mxu0 %v250
    %941 = vmatprep.subr.mxu0 %v258
    %942 = vmatpush1.msra.mxu0 %v257
    %943 = vmatprep.subr.mxu0 %v265
    %944 = vmatpush1.msra.mxu0 %v264
    %945 = vmatprep.subr.mxu0 %v272
    %946 = vmatpush1.msra.mxu0 %v271
    %947 = vmatprep.subr.mxu0 %v279
    %948 = vmatpush1.msra.mxu0 %v278
    %949 = vmatprep.subr.mxu0 %v286
    %950 = vmatpush1.msra.mxu0 %v285
    %951 = vmatprep.subr.mxu0 %v293
    %952 = vmatpush1.msra.mxu0 %v292
    %953 = vmatprep.subr.mxu0 %v300
    %954 = vmatpush1.msra.mxu0 %v299
    %955 = vmatprep.subr.mxu0 %v307
    %956 = vmatpush1.msra.mxu0 %v306
    %957 = vmatprep.subr.mxu0 %v314
    %958 = vmatpush1.msra.mxu0 %v313
    %959 = vmatprep.subr.mxu0 %v321
    %960 = vmatpush1.msra.mxu0 %v320
    %961 = vmatprep.subr.mxu0 %v328
    %962 = vmatpush1.msra.mxu0 %v327
    %963 = vmatprep.subr.mxu0 %v335
    %964 = vmatpush1.msra.mxu0 %v334
    %965 = vmatprep.subr.mxu0 %v342
    %966 = vmatpush1.msra.mxu0 %v341
    %967 = vmatprep.mubr.f32.mxu0 %v91
    %968 = vmatmul.mubr.f32.gmra.mrb[0].mxu0 %v90
    %v969 = vpop.f32.mrb[0].mxu0
    %v970 = vadd.f32 0.0, %v969
    %v971 = vpop.f32.mrb[0].mxu0
    %v972 = vadd.f32 0.0, %v971
    %973 = vmatprep.mubr.f32.mxu0 %v94
    %974 = vmatmul.mubr.f32.gmra.mrb[0].mxu0 %v93
    %v975 = vpop.f32.mrb[0].mxu0
    %v976 = vadd.f32 0.0, %v975
    %v977 = vpop.f32.mrb[0].mxu0
    %v978 = vadd.f32 0.0, %v977
    %979 = vmatprep.mubr.f32.mxu0 %v97
    %980 = vmatmul.mubr.f32.gmra.mrb[0].mxu0 %v96
    %v981 = vpop.f32.mrb[0].mxu0
    %v982 = vadd.f32 0.0, %v981
    %v983 = vpop.f32.mrb[0].mxu0
    %v984 = vadd.f32 0.0, %v983
    %985 = vmatprep.mubr.f32.mxu0 %v100
    %986 = vmatmul.mubr.f32.gmra.mrb[0].mxu0 %v99
    %v987 = vpop.f32.mrb[0].mxu0
    %v988 = vadd.f32 0.0, %v987
    %v989 = vpop.f32.mrb[0].mxu0
    %v990 = vadd.f32 0.0, %v989
    %991 = vmatprep.mubr.f32.mxu0 %v103
    %992 = vmatmul.mubr.f32.gmra.mrb[0].mxu0 %v102
    %v993 = vpop.f32.mrb[0].mxu0
    %v994 = vadd.f32 0.0, %v993
    %v995 = vpop.f32.mrb[0].mxu0
    %v996 = vadd.f32 0.0, %v995
    %997 = vmatprep.mubr.f32.mxu0 %v106
    %998 = vmatmul.mubr.f32.gmra.mrb[0].mxu0 %v105
    %v999 = vpop.f32.mrb[0].mxu0
    %v1000 = vadd.f32 0.0, %v999
    %v1001 = vpop.f32.mrb[0].mxu0
    %v1002 = vadd.f32 0.0, %v1001
    %1003 = vmatprep.mubr.f32.mxu0 %v109
    %1004 = vmatmul.mubr.f32.gmra.mrb[0].mxu0 %v108
    %v1005 = vpop.f32.mrb[0].mxu0
    %v1006 = vadd.f32 0.0, %v1005
    %v1007 = vpop.f32.mrb[0].mxu0
    %v1008 = vadd.f32 0.0, %v1007
    %1009 = vmatprep.mubr.f32.mxu0 %v112
    %1010 = vmatmul.mubr.f32.gmra.mrb[0].mxu0 %v111
    %v1011 = vpop.f32.mrb[0].mxu0
    %v1012 = vadd.f32 0.0, %v1011
    %v1013 = vpop.f32.mrb[0].mxu0
    %v1014 = vadd.f32 0.0, %v1013
    %1015 = vmatprep.mubr.f32.mxu0 %v115
    %1016 = vmatmul.mubr.f32.gmra.mrb[0].mxu0 %v114
    %v1017 = vpop.f32.mrb[0].mxu0
    %v1018 = vadd.f32 0.0, %v1017
    %v1019 = vpop.f32.mrb[0].mxu0
    %v1020 = vadd.f32 0.0, %v1019
    %1021 = vmatprep.mubr.f32.mxu0 %v118
    %1022 = vmatmul.mubr.f32.gmra.mrb[0].mxu0 %v117
    %v1023 = vpop.f32.mrb[0].mxu0
    %v1024 = vadd.f32 0.0, %v1023
    %v1025 = vpop.f32.mrb[0].mxu0
    %v1026 = vadd.f32 0.0, %v1025
    %1027 = vdwg.mxu0
    %1028 = vmatprep.subr.mxu0 %v349
    %1029 = vmatpush1.msra.mxu0 %v348
    %1030 = vmatprep.subr.mxu0 %v356
    %1031 = vmatpush1.msra.mxu0 %v355
    %1032 = vmatprep.subr.mxu0 %v363
    %1033 = vmatpush1.msra.mxu0 %v362
    %1034 = vmatprep.subr.mxu0 %v370
    %1035 = vmatpush1.msra.mxu0 %v369
    %1036 = vmatprep.subr.mxu0 0.0
    %1037 = vmatpush1.msra.mxu0 0.0
    %1038 = vmatprep.subr.mxu0 0.0
    %1039 = vmatpush1.msra.mxu0 0.0
    %1040 = vmatprep.subr.mxu0 0.0
    %1041 = vmatpush1.msra.mxu0 0.0
    %1042 = vmatprep.subr.mxu0 0.0
    %1043 = vmatpush1.msra.mxu0 0.0
    %1044 = vmatprep.subr.mxu0 0.0
    %1045 = vmatpush1.msra.mxu0 0.0
    %1046 = vmatprep.subr.mxu0 0.0
    %1047 = vmatpush1.msra.mxu0 0.0
    %1048 = vmatprep.subr.mxu0 0.0
    %1049 = vmatpush1.msra.mxu0 0.0
    %1050 = vmatprep.subr.mxu0 0.0
    %1051 = vmatpush1.msra.mxu0 0.0
    %1052 = vmatprep.subr.mxu0 0.0
    %1053 = vmatpush1.msra.mxu0 0.0
    %1054 = vmatprep.subr.mxu0 0.0
    %1055 = vmatpush1.msra.mxu0 0.0
    %1056 = vmatprep.subr.mxu0 0.0
    %1057 = vmatpush1.msra.mxu0 0.0
    %1058 = vmatprep.subr.mxu0 0.0
    %1059 = vmatpush1.msra.mxu0 0.0
    %1060 = vmatprep.subr.mxu0 0.0
    %1061 = vmatpush1.msra.mxu0 0.0
    %1062 = vmatprep.subr.mxu0 0.0
    %1063 = vmatpush1.msra.mxu0 0.0
    %1064 = vmatprep.subr.mxu0 0.0
    %1065 = vmatpush1.msra.mxu0 0.0
    %1066 = vmatprep.subr.mxu0 0.0
    %1067 = vmatpush1.msra.mxu0 0.0
    %1068 = vmatprep.subr.mxu0 0.0
    %1069 = vmatpush1.msra.mxu0 0.0
    %1070 = vmatprep.subr.mxu0 0.0
    %1071 = vmatpush1.msra.mxu0 0.0
    %1072 = vmatprep.subr.mxu0 0.0
    %1073 = vmatpush1.msra.mxu0 0.0
    %1074 = vmatprep.subr.mxu0 0.0
    %1075 = vmatpush1.msra.mxu0 0.0
    %1076 = vmatprep.subr.mxu0 0.0
    %1077 = vmatpush1.msra.mxu0 0.0
    %1078 = vmatprep.subr.mxu0 0.0
    %1079 = vmatpush1.msra.mxu0 0.0
    %1080 = vmatprep.subr.mxu0 0.0
    %1081 = vmatpush1.msra.mxu0 0.0
    %1082 = vmatprep.subr.mxu0 0.0
    %1083 = vmatpush1.msra.mxu0 0.0
    %1084 = vmatprep.subr.mxu0 0.0
    %1085 = vmatpush1.msra.mxu0 0.0
    %1086 = vmatprep.subr.mxu0 0.0
    %1087 = vmatpush1.msra.mxu0 0.0
    %1088 = vmatprep.subr.mxu0 0.0
    %1089 = vmatpush1.msra.mxu0 0.0
    %1090 = vmatprep.subr.mxu0 0.0
    %1091 = vmatpush1.msra.mxu0 0.0
    %1092 = vmatprep.mubr.f32.mxu0 0.0
    %1093 = vmatmul.mubr.f32.gmra.mrb[0].mxu0 %v374
    %v1094 = vpop.f32.mrb[0].mxu0
    %v1095 = vadd.f32 %v970, %v1094
    %v1096 = vpop.f32.mrb[0].mxu0
    %v1097 = vadd.f32 %v972, %v1096
    %1098 = vmatprep.mubr.f32.mxu0 0.0
    %1099 = vmatmul.mubr.f32.gmra.mrb[0].mxu0 %v377
    %v1100 = vpop.f32.mrb[0].mxu0
    %v1101 = vadd.f32 %v976, %v1100
    %v1102 = vpop.f32.mrb[0].mxu0
    %v1103 = vadd.f32 %v978, %v1102
    %1104 = vmatprep.mubr.f32.mxu0 0.0
    %1105 = vmatmul.mubr.f32.gmra.mrb[0].mxu0 %v380
    %v1106 = vpop.f32.mrb[0].mxu0
    %v1107 = vadd.f32 %v982, %v1106
    %v1108 = vpop.f32.mrb[0].mxu0
    %v1109 = vadd.f32 %v984, %v1108
    %1110 = vmatprep.mubr.f32.mxu0 0.0
    %1111 = vmatmul.mubr.f32.gmra.mrb[0].mxu0 %v383
    %v1112 = vpop.f32.mrb[0].mxu0
    %v1113 = vadd.f32 %v988, %v1112
    %v1114 = vpop.f32.mrb[0].mxu0
    %v1115 = vadd.f32 %v990, %v1114
    %1116 = vmatprep.mubr.f32.mxu0 0.0
    %1117 = vmatmul.mubr.f32.gmra.mrb[0].mxu0 %v386
    %v1118 = vpop.f32.mrb[0].mxu0
    %v1119 = vadd.f32 %v994, %v1118
    %v1120 = vpop.f32.mrb[0].mxu0
    %v1121 = vadd.f32 %v996, %v1120
    %1122 = vmatprep.mubr.f32.mxu0 0.0
    %1123 = vmatmul.mubr.f32.gmra.mrb[0].mxu0 %v389
    %v1124 = vpop.f32.mrb[0].mxu0
    %v1125 = vadd.f32 %v1000, %v1124
    %v1126 = vpop.f32.mrb[0].mxu0
    %v1127 = vadd.f32 %v1002, %v1126
    %1128 = vmatprep.mubr.f32.mxu0 0.0
    %1129 = vmatmul.mubr.f32.gmra.mrb[0].mxu0 %v392
    %v1130 = vpop.f32.mrb[0].mxu0
    %v1131 = vadd.f32 %v1006, %v1130
    %v1132 = vpop.f32.mrb[0].mxu0
    %v1133 = vadd.f32 %v1008, %v1132
    %1134 = vmatprep.mubr.f32.mxu0 0.0
    %1135 = vmatmul.mubr.f32.gmra.mrb[0].mxu0 %v395
    %v1136 = vpop.f32.mrb[0].mxu0
    %v1137 = vadd.f32 %v1012, %v1136
    %v1138 = vpop.f32.mrb[0].mxu0
    %v1139 = vadd.f32 %v1014, %v1138
    %1140 = vmatprep.mubr.f32.mxu0 0.0
    %1141 = vmatmul.mubr.f32.gmra.mrb[0].mxu0 %v398
    %v1142 = vpop.f32.mrb[0].mxu0
    %v1143 = vadd.f32 %v1018, %v1142
    %v1144 = vpop.f32.mrb[0].mxu0
    %v1145 = vadd.f32 %v1020, %v1144
    %1146 = vmatprep.mubr.f32.mxu0 0.0
    %1147 = vmatmul.mubr.f32.gmra.mrb[0].mxu0 %v401
    %v1148 = vpop.f32.mrb[0].mxu0
    %v1149 = vadd.f32 %v1024, %v1148
    %v1150 = vpop.f32.mrb[0].mxu0
    %v1151 = vadd.f32 %v1026, %v1150
    %1152 = vdwg.mxu0
    %1153 = vmatprep.subr.mxu0 0.0
    %1154 = vmatpush1.msra.mxu0 %v126
    %1155 = vmatprep.subr.mxu0 0.0
    %1156 = vmatpush1.msra.mxu0 %v133
    %1157 = vmatprep.subr.mxu0 0.0
    %1158 = vmatpush1.msra.mxu0 %v140
    %1159 = vmatprep.subr.mxu0 0.0
    %1160 = vmatpush1.msra.mxu0 %v147
    %1161 = vmatprep.subr.mxu0 0.0
    %1162 = vmatpush1.msra.mxu0 %v154
    %1163 = vmatprep.subr.mxu0 0.0
    %1164 = vmatpush1.msra.mxu0 %v161
    %1165 = vmatprep.subr.mxu0 0.0
    %1166 = vmatpush1.msra.mxu0 %v168
    %1167 = vmatprep.subr.mxu0 0.0
    %1168 = vmatpush1.msra.mxu0 %v175
    %1169 = vmatprep.subr.mxu0 0.0
    %1170 = vmatpush1.msra.mxu0 %v182
    %1171 = vmatprep.subr.mxu0 0.0
    %1172 = vmatpush1.msra.mxu0 %v189
    %1173 = vmatprep.subr.mxu0 0.0
    %1174 = vmatpush1.msra.mxu0 %v196
    %1175 = vmatprep.subr.mxu0 0.0
    %1176 = vmatpush1.msra.mxu0 %v203
    %1177 = vmatprep.subr.mxu0 0.0
    %1178 = vmatpush1.msra.mxu0 %v210
    %1179 = vmatprep.subr.mxu0 0.0
    %1180 = vmatpush1.msra.mxu0 %v217
    %1181 = vmatprep.subr.mxu0 0.0
    %1182 = vmatpush1.msra.mxu0 %v224
    %1183 = vmatprep.subr.mxu0 0.0
    %1184 = vmatpush1.msra.mxu0 %v231
    %1185 = vmatprep.subr.mxu0 0.0
    %1186 = vmatpush1.msra.mxu0 %v238
    %1187 = vmatprep.subr.mxu0 0.0
    %1188 = vmatpush1.msra.mxu0 %v245
    %1189 = vmatprep.subr.mxu0 0.0
    %1190 = vmatpush1.msra.mxu0 %v252
    %1191 = vmatprep.subr.mxu0 0.0
    %1192 = vmatpush1.msra.mxu0 %v259
    %1193 = vmatprep.subr.mxu0 0.0
    %1194 = vmatpush1.msra.mxu0 %v266
    %1195 = vmatprep.subr.mxu0 0.0
    %1196 = vmatpush1.msra.mxu0 %v273
    %1197 = vmatprep.subr.mxu0 0.0
    %1198 = vmatpush1.msra.mxu0 %v280
    %1199 = vmatprep.subr.mxu0 0.0
    %1200 = vmatpush1.msra.mxu0 %v287
    %1201 = vmatprep.subr.mxu0 0.0
    %1202 = vmatpush1.msra.mxu0 %v294
    %1203 = vmatprep.subr.mxu0 0.0
    %1204 = vmatpush1.msra.mxu0 %v301
    %1205 = vmatprep.subr.mxu0 0.0
    %1206 = vmatpush1.msra.mxu0 %v308
    %1207 = vmatprep.subr.mxu0 0.0
    %1208 = vmatpush1.msra.mxu0 %v315
    %1209 = vmatprep.subr.mxu0 0.0
    %1210 = vmatpush1.msra.mxu0 %v322
    %1211 = vmatprep.subr.mxu0 0.0
    %1212 = vmatpush1.msra.mxu0 %v329
    %1213 = vmatprep.subr.mxu0 0.0
    %1214 = vmatpush1.msra.mxu0 %v336
    %1215 = vmatprep.subr.mxu0 0.0
    %1216 = vmatpush1.msra.mxu0 %v343
    %1217 = vmatprep.mubr.f32.mxu0 %v91
    %1218 = vmatmul.mubr.f32.gmra.mrb[0].mxu0 %v90
    %v1219 = vpop.f32.mrb[0].mxu0
    %v1220 = vadd.f32 0.0, %v1219
    %v1221 = vpop.f32.mrb[0].mxu0
    %1222 = vmatprep.mubr.f32.mxu0 %v94
    %1223 = vmatmul.mubr.f32.gmra.mrb[0].mxu0 %v93
    %v1224 = vpop.f32.mrb[0].mxu0
    %v1225 = vadd.f32 0.0, %v1224
    %v1226 = vpop.f32.mrb[0].mxu0
    %1227 = vmatprep.mubr.f32.mxu0 %v97
    %1228 = vmatmul.mubr.f32.gmra.mrb[0].mxu0 %v96
    %v1229 = vpop.f32.mrb[0].mxu0
    %v1230 = vadd.f32 0.0, %v1229
    %v1231 = vpop.f32.mrb[0].mxu0
    %1232 = vmatprep.mubr.f32.mxu0 %v100
    %1233 = vmatmul.mubr.f32.gmra.mrb[0].mxu0 %v99
    %v1234 = vpop.f32.mrb[0].mxu0
    %v1235 = vadd.f32 0.0, %v1234
    %v1236 = vpop.f32.mrb[0].mxu0
    %1237 = vmatprep.mubr.f32.mxu0 %v103
    %1238 = vmatmul.mubr.f32.gmra.mrb[0].mxu0 %v102
    %v1239 = vpop.f32.mrb[0].mxu0
    %v1240 = vadd.f32 0.0, %v1239
    %v1241 = vpop.f32.mrb[0].mxu0
    %1242 = vmatprep.mubr.f32.mxu0 %v106
    %1243 = vmatmul.mubr.f32.gmra.mrb[0].mxu0 %v105
    %v1244 = vpop.f32.mrb[0].mxu0
    %v1245 = vadd.f32 0.0, %v1244
    %v1246 = vpop.f32.mrb[0].mxu0
    %1247 = vmatprep.mubr.f32.mxu0 %v109
    %1248 = vmatmul.mubr.f32.gmra.mrb[0].mxu0 %v108
    %v1249 = vpop.f32.mrb[0].mxu0
    %v1250 = vadd.f32 0.0, %v1249
    %v1251 = vpop.f32.mrb[0].mxu0
    %1252 = vmatprep.mubr.f32.mxu0 %v112
    %1253 = vmatmul.mubr.f32.gmra.mrb[0].mxu0 %v111
    %v1254 = vpop.f32.mrb[0].mxu0
    %v1255 = vadd.f32 0.0, %v1254
    %v1256 = vpop.f32.mrb[0].mxu0
    %1257 = vmatprep.mubr.f32.mxu0 %v115
    %1258 = vmatmul.mubr.f32.gmra.mrb[0].mxu0 %v114
    %v1259 = vpop.f32.mrb[0].mxu0
    %v1260 = vadd.f32 0.0, %v1259
    %v1261 = vpop.f32.mrb[0].mxu0
    %1262 = vmatprep.mubr.f32.mxu0 %v118
    %1263 = vmatmul.mubr.f32.gmra.mrb[0].mxu0 %v117
    %v1264 = vpop.f32.mrb[0].mxu0
    %v1265 = vadd.f32 0.0, %v1264
    %v1266 = vpop.f32.mrb[0].mxu0
    %1267 = vdwg.mxu0
    %1268 = vmatprep.subr.mxu0 0.0
    %1269 = vmatpush1.msra.mxu0 %v350
    %1270 = vmatprep.subr.mxu0 0.0
    %1271 = vmatpush1.msra.mxu0 %v357
    %1272 = vmatprep.subr.mxu0 0.0
    %1273 = vmatpush1.msra.mxu0 %v364
    %1274 = vmatprep.subr.mxu0 0.0
    %1275 = vmatpush1.msra.mxu0 %v371
    %1276 = vmatprep.subr.mxu0 0.0
    %1277 = vmatpush1.msra.mxu0 0.0
    %1278 = vmatprep.subr.mxu0 0.0
    %1279 = vmatpush1.msra.mxu0 0.0
    %1280 = vmatprep.subr.mxu0 0.0
    %1281 = vmatpush1.msra.mxu0 0.0
    %1282 = vmatprep.subr.mxu0 0.0
    %1283 = vmatpush1.msra.mxu0 0.0
    %1284 = vmatprep.subr.mxu0 0.0
    %1285 = vmatpush1.msra.mxu0 0.0
    %1286 = vmatprep.subr.mxu0 0.0
    %1287 = vmatpush1.msra.mxu0 0.0
    %1288 = vmatprep.subr.mxu0 0.0
    %1289 = vmatpush1.msra.mxu0 0.0
    %1290 = vmatprep.subr.mxu0 0.0
    %1291 = vmatpush1.msra.mxu0 0.0
    %1292 = vmatprep.subr.mxu0 0.0
    %1293 = vmatpush1.msra.mxu0 0.0
    %1294 = vmatprep.subr.mxu0 0.0
    %1295 = vmatpush1.msra.mxu0 0.0
    %1296 = vmatprep.subr.mxu0 0.0
    %1297 = vmatpush1.msra.mxu0 0.0
    %1298 = vmatprep.subr.mxu0 0.0
    %1299 = vmatpush1.msra.mxu0 0.0
    %1300 = vmatprep.subr.mxu0 0.0
    %1301 = vmatpush1.msra.mxu0 0.0
    %1302 = vmatprep.subr.mxu0 0.0
    %1303 = vmatpush1.msra.mxu0 0.0
    %1304 = vmatprep.subr.mxu0 0.0
    %1305 = vmatpush1.msra.mxu0 0.0
    %1306 = vmatprep.subr.mxu0 0.0
    %1307 = vmatpush1.msra.mxu0 0.0
    %1308 = vmatprep.subr.mxu0 0.0
    %1309 = vmatpush1.msra.mxu0 0.0
    %1310 = vmatprep.subr.mxu0 0.0
    %1311 = vmatpush1.msra.mxu0 0.0
    %1312 = vmatprep.subr.mxu0 0.0
    %1313 = vmatpush1.msra.mxu0 0.0
    %1314 = vmatprep.subr.mxu0 0.0
    %1315 = vmatpush1.msra.mxu0 0.0
    %1316 = vmatprep.subr.mxu0 0.0
    %1317 = vmatpush1.msra.mxu0 0.0
    %1318 = vmatprep.subr.mxu0 0.0
    %1319 = vmatpush1.msra.mxu0 0.0
    %1320 = vmatprep.subr.mxu0 0.0
    %1321 = vmatpush1.msra.mxu0 0.0
    %1322 = vmatprep.subr.mxu0 0.0
    %1323 = vmatpush1.msra.mxu0 0.0
    %1324 = vmatprep.subr.mxu0 0.0
    %1325 = vmatpush1.msra.mxu0 0.0
    %1326 = vmatprep.subr.mxu0 0.0
    %1327 = vmatpush1.msra.mxu0 0.0
    %1328 = vmatprep.subr.mxu0 0.0
    %1329 = vmatpush1.msra.mxu0 0.0
    %1330 = vmatprep.subr.mxu0 0.0
    %1331 = vmatpush1.msra.mxu0 0.0
    %1332 = vmatprep.mubr.f32.mxu0 0.0
    %1333 = vmatmul.mubr.f32.gmra.mrb[0].mxu0 %v374
    %v1334 = vpop.f32.mrb[0].mxu0
    %v1335 = vadd.f32 %v1220, %v1334
    %v1336 = vpop.f32.mrb[0].mxu0
    %1337 = vmatprep.mubr.f32.mxu0 0.0
    %1338 = vmatmul.mubr.f32.gmra.mrb[0].mxu0 %v377
    %v1339 = vpop.f32.mrb[0].mxu0
    %v1340 = vadd.f32 %v1225, %v1339
    %v1341 = vpop.f32.mrb[0].mxu0
    %1342 = vmatprep.mubr.f32.mxu0 0.0
    %1343 = vmatmul.mubr.f32.gmra.mrb[0].mxu0 %v380
    %v1344 = vpop.f32.mrb[0].mxu0
    %v1345 = vadd.f32 %v1230, %v1344
    %v1346 = vpop.f32.mrb[0].mxu0
    %1347 = vmatprep.mubr.f32.mxu0 0.0
    %1348 = vmatmul.mubr.f32.gmra.mrb[0].mxu0 %v383
    %v1349 = vpop.f32.mrb[0].mxu0
    %v1350 = vadd.f32 %v1235, %v1349
    %v1351 = vpop.f32.mrb[0].mxu0
    %1352 = vmatprep.mubr.f32.mxu0 0.0
    %1353 = vmatmul.mubr.f32.gmra.mrb[0].mxu0 %v386
    %v1354 = vpop.f32.mrb[0].mxu0
    %v1355 = vadd.f32 %v1240, %v1354
    %v1356 = vpop.f32.mrb[0].mxu0
    %1357 = vmatprep.mubr.f32.mxu0 0.0
    %1358 = vmatmul.mubr.f32.gmra.mrb[0].mxu0 %v389
    %v1359 = vpop.f32.mrb[0].mxu0
    %v1360 = vadd.f32 %v1245, %v1359
    %v1361 = vpop.f32.mrb[0].mxu0
    %1362 = vmatprep.mubr.f32.mxu0 0.0
    %1363 = vmatmul.mubr.f32.gmra.mrb[0].mxu0 %v392
    %v1364 = vpop.f32.mrb[0].mxu0
    %v1365 = vadd.f32 %v1250, %v1364
    %v1366 = vpop.f32.mrb[0].mxu0
    %1367 = vmatprep.mubr.f32.mxu0 0.0
    %1368 = vmatmul.mubr.f32.gmra.mrb[0].mxu0 %v395
    %v1369 = vpop.f32.mrb[0].mxu0
    %v1370 = vadd.f32 %v1255, %v1369
    %v1371 = vpop.f32.mrb[0].mxu0
    %1372 = vmatprep.mubr.f32.mxu0 0.0
    %1373 = vmatmul.mubr.f32.gmra.mrb[0].mxu0 %v398
    %v1374 = vpop.f32.mrb[0].mxu0
    %v1375 = vadd.f32 %v1260, %v1374
    %v1376 = vpop.f32.mrb[0].mxu0
    %1377 = vmatprep.mubr.f32.mxu0 0.0
    %1378 = vmatmul.mubr.f32.gmra.mrb[0].mxu0 %v401
    %v1379 = vpop.f32.mrb[0].mxu0
    %v1380 = vadd.f32 %v1265, %v1379
    %v1381 = vpop.f32.mrb[0].mxu0
    %1382 = vdwg.mxu0
    %1383 = vst [vmem:[#allocation7] sm:$0xff] %v595
    %1384 = vst [vmem:[#allocation7 + $0x8] sm:$0xff] %v597
    %1385 = vst [vmem:[#allocation7 + $0x10] sm:$0xff] %v845
    %1386 = vst [vmem:[#allocation7 + $0x18] sm:$0xff] %v847
    %1387 = vst [vmem:[#allocation7 + $0x20] sm:$0xff] %v1095
    %1388 = vst [vmem:[#allocation7 + $0x28] sm:$0xff] %v1097
    %vm1389 = vcmask 130048
    %1390 = vst.msk [vmem:[#allocation7 + $0x30] sm:$0xff] %vm1389, %v1335
    %1391 = vst [vmem:[#allocation7 + $0x38] sm:$0xff] %v601
    %1392 = vst [vmem:[#allocation7 + $0x40] sm:$0xff] %v603
    %1393 = vst [vmem:[#allocation7 + $0x48] sm:$0xff] %v851
    %1394 = vst [vmem:[#allocation7 + $0x50] sm:$0xff] %v853
    %1395 = vst [vmem:[#allocation7 + $0x58] sm:$0xff] %v1101
    %1396 = vst [vmem:[#allocation7 + $0x60] sm:$0xff] %v1103
    %1397 = vst.msk [vmem:[#allocation7 + $0x68] sm:$0xff] %vm1389, %v1340
    %1398 = vst [vmem:[#allocation7 + $0x70] sm:$0xff] %v607
    %1399 = vst [vmem:[#allocation7 + $0x78] sm:$0xff] %v609
    %1400 = vst [vmem:[#allocation7 + $0x80] sm:$0xff] %v857
    %1401 = vst [vmem:[#allocation7 + $0x88] sm:$0xff] %v859
    %1402 = vst [vmem:[#allocation7 + $0x90] sm:$0xff] %v1107
    %1403 = vst [vmem:[#allocation7 + $0x98] sm:$0xff] %v1109
    %1404 = vst.msk [vmem:[#allocation7 + $0xa0] sm:$0xff] %vm1389, %v1345
    %1405 = vst [vmem:[#allocation7 + $0xa8] sm:$0xff] %v613
    %1406 = vst [vmem:[#allocation7 + $0xb0] sm:$0xff] %v615
    %1407 = vst [vmem:[#allocation7 + $0xb8] sm:$0xff] %v863
    %1408 = vst [vmem:[#allocation7 + $0xc0] sm:$0xff] %v865
    %1409 = vst [vmem:[#allocation7 + $0xc8] sm:$0xff] %v1113
    %1410 = vst [vmem:[#allocation7 + $0xd0] sm:$0xff] %v1115
    %1411 = vst.msk [vmem:[#allocation7 + $0xd8] sm:$0xff] %vm1389, %v1350
    %1412 = vst [vmem:[#allocation7 + $0xe0] sm:$0xff] %v619
    %1413 = vst [vmem:[#allocation7 + $0xe8] sm:$0xff] %v621
    %1414 = vst [vmem:[#allocation7 + $0xf0] sm:$0xff] %v869
    %1415 = vst [vmem:[#allocation7 + $0xf8] sm:$0xff] %v871
    %1416 = vst [vmem:[#allocation7 + $0x100] sm:$0xff] %v1119
    %1417 = vst [vmem:[#allocation7 + $0x108] sm:$0xff] %v1121
    %1418 = vst.msk [vmem:[#allocation7 + $0x110] sm:$0xff] %vm1389, %v1355
    %1419 = vst [vmem:[#allocation7 + $0x118] sm:$0xff] %v625
    %1420 = vst [vmem:[#allocation7 + $0x120] sm:$0xff] %v627
    %1421 = vst [vmem:[#allocation7 + $0x128] sm:$0xff] %v875
    %1422 = vst [vmem:[#allocation7 + $0x130] sm:$0xff] %v877
    %1423 = vst [vmem:[#allocation7 + $0x138] sm:$0xff] %v1125
    %1424 = vst [vmem:[#allocation7 + $0x140] sm:$0xff] %v1127
    %1425 = vst.msk [vmem:[#allocation7 + $0x148] sm:$0xff] %vm1389, %v1360
    %1426 = vst [vmem:[#allocation7 + $0x150] sm:$0xff] %v631
    %1427 = vst [vmem:[#allocation7 + $0x158] sm:$0xff] %v633
    %1428 = vst [vmem:[#allocation7 + $0x160] sm:$0xff] %v881
    %1429 = vst [vmem:[#allocation7 + $0x168] sm:$0xff] %v883
    %1430 = vst [vmem:[#allocation7 + $0x170] sm:$0xff] %v1131
    %1431 = vst [vmem:[#allocation7 + $0x178] sm:$0xff] %v1133
    %1432 = vst.msk [vmem:[#allocation7 + $0x180] sm:$0xff] %vm1389, %v1365
    %1433 = vst [vmem:[#allocation7 + $0x188] sm:$0xff] %v637
    %1434 = vst [vmem:[#allocation7 + $0x190] sm:$0xff] %v639
    %1435 = vst [vmem:[#allocation7 + $0x198] sm:$0xff] %v887
    %1436 = vst [vmem:[#allocation7 + $0x1a0] sm:$0xff] %v889
    %1437 = vst [vmem:[#allocation7 + $0x1a8] sm:$0xff] %v1137
    %1438 = vst [vmem:[#allocation7 + $0x1b0] sm:$0xff] %v1139
    %1439 = vst.msk [vmem:[#allocation7 + $0x1b8] sm:$0xff] %vm1389, %v1370
    %1440 = vst [vmem:[#allocation7 + $0x1c0] sm:$0xff] %v643
    %1441 = vst [vmem:[#allocation7 + $0x1c8] sm:$0xff] %v645
    %1442 = vst [vmem:[#allocation7 + $0x1d0] sm:$0xff] %v893
    %1443 = vst [vmem:[#allocation7 + $0x1d8] sm:$0xff] %v895
    %1444 = vst [vmem:[#allocation7 + $0x1e0] sm:$0xff] %v1143
    %1445 = vst [vmem:[#allocation7 + $0x1e8] sm:$0xff] %v1145
    %1446 = vst.msk [vmem:[#allocation7 + $0x1f0] sm:$0xff] %vm1389, %v1375
    %1447 = vst [vmem:[#allocation7 + $0x1f8] sm:$0xff] %v649
    %1448 = vst [vmem:[#allocation7 + $0x200] sm:$0xff] %v651
    %1449 = vst [vmem:[#allocation7 + $0x208] sm:$0xff] %v899
    %1450 = vst [vmem:[#allocation7 + $0x210] sm:$0xff] %v901
    %1451 = vst [vmem:[#allocation7 + $0x218] sm:$0xff] %v1149
    %1452 = vst [vmem:[#allocation7 + $0x220] sm:$0xff] %v1151
    %1453 = vst.msk [vmem:[#allocation7 + $0x228] sm:$0xff] %vm1389, %v1380
    // Predicated region
    $region22: #{tpu_custom_call.1} parent=1 // pred_check
      _
    $region23: #{tpu_custom_call.1} parent=1 // pred_check_branch
      %1455 = sbr.rel (0) target = $region25
    $region24: #{tpu_custom_call.1} parent=1 // pred_region
      %s1457 = ssub.s32 8960, 8960
      %1458 = vsyncadd [#allocation4], %s1457
      %s1459 = sshll.u32 [#allocation7], 4
      %s1460 = int_to_ptr.vmem [resolvable:$true] %s1459
      %1465 = dma.vmem_to_hbm [thread:$0]  %s1460, 8960, %s3, [#allocation4], 896, 896, 56
    $region25: #{tpu_custom_call.1} parent=1 // pred_fallthru
      _
    // Predicated region
    $region26: #{tpu_custom_call.1} parent=1 // pred_check
      _
    $region27: #{tpu_custom_call.1} parent=1 // pred_check_branch
      %1467 = sbr.rel (0) target = $region29
    $region28: #{tpu_custom_call.1} parent=1 // pred_region
      %1468 = dma.done [#allocation4], 8960
    $region29: #{tpu_custom_call.1} parent=1 // pred_fallthru
      _
    %1469 = vsyncpa [#allocation3], 1
    %1470 = vsyncpa [#allocation6], 1
    %1471 = vsyncpa [#allocation4], 1

</llo_original>
